<compile_context>
chip_gen: v6e
topology: v6e:2x2x1
jax: 0.10.0
libtpu: 0.0.40
codegen_flags: <defaults>
</compile_context>

<pallas_src>
import jax
import jax.numpy as jnp
from jax.experimental import pallas as pl
from jax.experimental.pallas import tpu as pltpu

# ---------------- configuration (small synthetic BERT) ----------------
B, S = 2, 8            # batch, sequence length
T = B * S              # flattened batch*seq rows processed by the kernel
H = 32                 # hidden size
NH = 4                 # attention heads
DH = H // NH           # head dim
I = 64                 # FFN intermediate size
VOCAB = 50             # "resized" token embedding table
MAX_POS = 16
TYPE_VOCAB = 3         # 2 original token types + 1 extra (extra_token_type_embedding)
N_LAYERS = 2
LN_EPS = 1e-12
DTYPE = jnp.float32
WDTYPE = jnp.bfloat16  # matmul-weight storage dtype

# packed per-layer small-param row indices: lparams[l, row, :3H]
P_BQKV, P_BO, P_LN1G, P_LN1B, P_B1, P_B2, P_LN2G, P_LN2B = range(8)
N_LROWS = 8
# packed global small-param row indices: gparams[row, :H]
G_EMBG, G_EMBB, G_SPW0, G_SPW1, G_SPB0, G_SPB1 = range(6)
N_GROWS = 6


# ---------------- fused encoder kernel ----------------
def _encoder_kernel(x_ref, mask_ref, gp_ref, lp_ref,
                    wqkv_ref, wo_ref, w1_ref, w2_ref,
                    out_ref, ctx_ref):
    f32 = jnp.float32
    bf16 = jnp.bfloat16

    def ln(x, g, b):
        # fp32 LayerNorm (eps=1e-12 needs fp32; v5e has no bf16 VPU anyway)
        mu = jnp.mean(x, axis=-1, keepdims=True)
        xc = x - mu
        var = jnp.mean(xc * xc, axis=-1, keepdims=True)
        return xc * jax.lax.rsqrt(var + LN_EPS) * g + b

    def mm(x, w):
        # bf16 MXU inputs, fp32 accumulation
        return jnp.dot(x.astype(bf16), w, preferred_element_type=f32)

    gp = gp_ref[...]                                       # [6, H] packed globals
    x = x_ref[...].astype(f32)                             # [T, H] embedding sum
    h = ln(x, gp[G_EMBG:G_EMBG + 1, :], gp[G_EMBB:G_EMBB + 1, :])
    add_mask = mask_ref[...]                               # [T, T] block-diag mask, hoisted once

    for l in range(N_LAYERS):                              # static unrolled (N_LAYERS=2)
        lp = lp_ref[l]                                     # [8, 3H] packed per-layer params

        # ---- self-attention: fused QKV projection (1/sqrt(DH) pre-folded into Wq/bq) ----
        qkv = mm(h, wqkv_ref[l]) + lp[P_BQKV:P_BQKV + 1, :]            # [T, 3H]

        # relayout once to head-major [NH, T, DH] and use batched dots
        q = jnp.stack([qkv[:, hd * DH:(hd + 1) * DH]
                       for hd in range(NH)], axis=0).astype(bf16)
        k = jnp.stack([qkv[:, H + hd * DH:H + (hd + 1) * DH]
                       for hd in range(NH)], axis=0).astype(bf16)
        v = jnp.stack([qkv[:, 2 * H + hd * DH:2 * H + (hd + 1) * DH]
                       for hd in range(NH)], axis=0).astype(bf16)

        s = jnp.einsum('hqd,hkd->hqk', q, k, preferred_element_type=f32)  # [NH, T, T]
        s = s + add_mask                                   # broadcast over head axis
        s = s - jnp.max(s, axis=-1, keepdims=True)         # kept: untrusted-input safety
        p = jnp.exp(s)
        inv = pl.reciprocal(jnp.sum(p, axis=-1, keepdims=True), approx=True)
        ctx = jnp.einsum('hqk,hkd->hqd', p.astype(bf16), v,
                         preferred_element_type=f32) * inv              # [NH, T, DH]

        # merge heads into one [T, H] block -> single output projection matmul
        for hd in range(NH):
            ctx_ref[:, hd * DH:(hd + 1) * DH] = ctx[hd]
        attn = mm(ctx_ref[...], wo_ref[l]) + lp[P_BO:P_BO + 1, :H]
        h = ln(attn + h, lp[P_LN1G:P_LN1G + 1, :H], lp[P_LN1B:P_LN1B + 1, :H])

        # ---- feed-forward ----
        ffn = mm(h, w1_ref[l]) + lp[P_B1:P_B1 + 1, :I]                 # [T, I]
        # tanh-approx GELU (HF BERT default is exact erf; differences are ~1e-3)
        c = 0.7978845608028654
        ffn = 0.5 * ffn * (1.0 + jnp.tanh(c * (ffn + 0.044715 * ffn * ffn * ffn)))
        ffn = mm(ffn, w2_ref[l]) + lp[P_B2:P_B2 + 1, :H]               # [T, H]
        h = ln(ffn + h, lp[P_LN2G:P_LN2G + 1, :H], lp[P_LN2B:P_LN2B + 1, :H])

    # ---- span head: emit logits already transposed, [2, T] (no host-side transpose) ----
    spw_t = gp[G_SPW0:G_SPW1 + 1, :].astype(bf16)          # [2, H] = span_w^T
    spb = gp[G_SPB0:G_SPB1 + 1, 0:1]                       # [2, 1] span bias (column form)
    logits_t = jax.lax.dot_general(spw_t, h.astype(bf16),
                                   (((1,), (1,)), ((), ())),
                                   preferred_element_type=f32) + spb   # [2, T]
    out_ref[...] = logits_t.astype(out_ref.dtype)


def encoder_pallas(x2d, mask2d, p):
    """x2d: [B*S, H] embedding sum, mask2d: [B*S, B*S] additive mask -> [2, B*S] logits."""
    # No grid: single kernel instance, whole arrays resident in VMEM at this size.
    return pl.pallas_call(
        _encoder_kernel,
        out_shape=jax.ShapeDtypeStruct((2, T), jnp.float32),
        scratch_shapes=[pltpu.VMEM((T, H), jnp.float32)],   # merged-heads context block
    )(x2d, mask2d, p["gparams"], p["lparams"],
      p["wqkv"], p["wo"], p["w1"], p["w2"])


# ---------------- parameters (deterministic synthetic init) ----------------
def init_params(key):
    ks = iter(jax.random.split(key, 32))

    def normal(shape, std=0.02):
        return (std * jax.random.normal(next(ks), shape)).astype(jnp.float32)

    # global packed small params: [6, H]
    span_w = normal((H, 2))                                 # span_layer: Linear(H -> 2)
    span_b = normal((2,))
    gparams = jnp.zeros((N_GROWS, H), DTYPE)
    gparams = gparams.at[G_EMBG].set(1.0)                   # embeddings LayerNorm gamma
    #             G_EMBB row stays zero                     # embeddings LayerNorm beta
    gparams = gparams.at[G_SPW0:G_SPW1 + 1, :].set(span_w.T)
    gparams = gparams.at[G_SPB0, 0].set(span_b[0])
    gparams = gparams.at[G_SPB1, 0].set(span_b[1])

    # fold the 1/sqrt(DH) attention scale into Wq / bq columns (free at init)
    col_scale = jnp.concatenate([jnp.full((H,), DH ** -0.5, jnp.float32),
                                 jnp.ones((2 * H,), jnp.float32)])

    # per-layer packed small params: [N_LAYERS, 8, 3H]
    lparams = jnp.zeros((N_LAYERS, N_LROWS, 3 * H), DTYPE)
    lparams = lparams.at[:, P_BQKV, :].set(normal((N_LAYERS, 3 * H)) * col_scale)
    lparams = lparams.at[:, P_BO, :H].set(normal((N_LAYERS, H)))
    lparams = lparams.at[:, P_LN1G, :H].set(1.0)
    lparams = lparams.at[:, P_B1, :I].set(normal((N_LAYERS, I)))
    lparams = lparams.at[:, P_B2, :H].set(normal((N_LAYERS, H)))
    lparams = lparams.at[:, P_LN2G, :H].set(1.0)
    # P_LN1B / P_LN2B rows stay zero (LayerNorm betas)

    return {
        "word_emb": normal((VOCAB, H)),
        "pos_emb": normal((MAX_POS, H)),
        "type_emb": normal((TYPE_VOCAB, H)),    # 2 + 1 extra row, as in CRE.__init__
        "gparams": gparams,
        "lparams": lparams,
        "wqkv": (normal((N_LAYERS, H, 3 * H)) * col_scale).astype(WDTYPE),
        "wo": normal((N_LAYERS, H, H)).astype(WDTYPE),
        "w1": normal((N_LAYERS, H, I)).astype(WDTYPE),
        "w2": normal((N_LAYERS, I, H)).astype(WDTYPE),
    }


# ---------------- forward pass ----------------
def cre_forward(params, input_ids, segment_ids, attention_masks):
    # TODO(synk): embedding gathers stay in plain JAX (data-dependent gather, not a tile hot path)
    we = jnp.take(params["word_emb"], input_ids, axis=0)              # [B,S,H]
    pe = params["pos_emb"][:S][None, :, :]                            # [1,S,H]
    te = jnp.take(params["type_emb"], segment_ids, axis=0)            # [B,S,H]
    x2d = (we + pe + te).astype(DTYPE).reshape(T, H)                  # fold batch: [B*S, H]

    # block-diagonal additive attention mask over the flattened batch*seq axis:
    # a row may only attend to unmasked keys of its own batch element (BERT: masked -> -10000)
    bidx = jnp.arange(T, dtype=jnp.int32) // S
    same_batch = bidx[:, None] == bidx[None, :]
    key_valid = attention_masks.reshape(T) > 0
    mask2d = jnp.where(same_batch & key_valid[None, :], 0.0, -10000.0).astype(jnp.float32)

    logits_t = encoder_pallas(x2d, mask2d, params)                    # [2, B*S]
    # kernel already emits the transposed layout; this reshape is free metadata
    logits_t = logits_t.reshape(2, B, S)
    start_logits, end_logits = logits_t[0], logits_t[1]               # each [B, S]
    return start_logits, end_logits


if __name__ == "__main__":
    key = jax.random.PRNGKey(0)
    pkey, ikey, skey, mkey = jax.random.split(key, 4)

    params = init_params(pkey)
    input_ids = jax.random.randint(ikey, (B, S), 0, VOCAB, dtype=jnp.int32)
    segment_ids = jax.random.randint(skey, (B, S), 0, TYPE_VOCAB, dtype=jnp.int32)
    attention_masks = (jax.random.uniform(mkey, (B, S)) > 0.2).astype(jnp.int32)
    attention_masks = attention_masks.at[:, 0].set(1)  # ensure each row has a valid token

    fwd = jax.jit(cre_forward)
    start_logits, end_logits = fwd(params, input_ids, segment_ids, attention_masks)
    jax.block_until_ready((start_logits, end_logits))

    assert start_logits.shape == (B, S) and end_logits.shape == (B, S)
    assert bool(jnp.all(jnp.isfinite(start_logits))) and bool(jnp.all(jnp.isfinite(end_logits)))
    print("KERNEL_OK")
</pallas_src>

<mosaic_0001>
module attributes {stable_mosaic.version = 11 : i64} {
  func.func @_encoder_kernel(%arg0: memref<16x32xf32, #tpu.memory_space<vmem>>, %arg1: memref<16x16xf32, #tpu.memory_space<vmem>>, %arg2: memref<6x32xf32, #tpu.memory_space<vmem>>, %arg3: memref<2x8x96xf32, #tpu.memory_space<vmem>>, %arg4: memref<2x32x96xbf16, #tpu.memory_space<vmem>>, %arg5: memref<2x32x32xbf16, #tpu.memory_space<vmem>>, %arg6: memref<2x32x64xbf16, #tpu.memory_space<vmem>>, %arg7: memref<2x64x32xbf16, #tpu.memory_space<vmem>>, %arg8: memref<2x16xf32, #tpu.memory_space<vmem>>, %arg9: memref<16x32xf32, #tpu.memory_space<vmem>>) attributes {dimension_semantics = [], scalar_prefetch = 0 : i64, scratch_operands = 1 : i64, tpu.core_type = #tpu.core_type<tc>} {
    %c0 = arith.constant 0 : index
    %c0_0 = arith.constant 0 : index
    %0 = vector.load %arg2[%c0, %c0_0] : memref<6x32xf32, #tpu.memory_space<vmem>>, vector<6x32xf32>
    %c0_1 = arith.constant 0 : index
    %c0_2 = arith.constant 0 : index
    %1 = vector.load %arg0[%c0_1, %c0_2] : memref<16x32xf32, #tpu.memory_space<vmem>>, vector<16x32xf32>
    %2 = vector.extract_strided_slice %0 {offsets = [0, 0], sizes = [1, 32], strides = [1, 1]} : vector<6x32xf32> to vector<1x32xf32>
    %3 = vector.extract_strided_slice %0 {offsets = [1, 0], sizes = [1, 32], strides = [1, 1]} : vector<6x32xf32> to vector<1x32xf32>
    %cst = arith.constant dense<0.000000e+00> : vector<16xf32>
    %4 = vector.multi_reduction <add>, %1, %cst [1] : vector<16x32xf32> to vector<16xf32>
    %5 = vector.shape_cast %4 : vector<16xf32> to vector<16x1xf32>
    %cst_3 = arith.constant 3.200000e+01 : f32
    %6 = vector.broadcast %cst_3 : f32 to vector<16x1xf32>
    %7 = arith.divf %5, %6 : vector<16x1xf32>
    %8 = vector.broadcast %7 : vector<16x1xf32> to vector<16x32xf32>
    %9 = arith.subf %1, %8 : vector<16x32xf32>
    %10 = arith.mulf %9, %9 : vector<16x32xf32>
    %cst_4 = arith.constant dense<0.000000e+00> : vector<16xf32>
    %11 = vector.multi_reduction <add>, %10, %cst_4 [1] : vector<16x32xf32> to vector<16xf32>
    %12 = vector.shape_cast %11 : vector<16xf32> to vector<16x1xf32>
    %cst_5 = arith.constant 3.200000e+01 : f32
    %13 = vector.broadcast %cst_5 : f32 to vector<16x1xf32>
    %14 = arith.divf %12, %13 : vector<16x1xf32>
    %cst_6 = arith.constant 9.99999996E-13 : f32
    %15 = vector.broadcast %cst_6 : f32 to vector<16x1xf32>
    %16 = arith.addf %14, %15 : vector<16x1xf32>
    %17 = math.rsqrt %16 : vector<16x1xf32>
    %18 = vector.broadcast %17 : vector<16x1xf32> to vector<16x32xf32>
    %19 = arith.mulf %9, %18 : vector<16x32xf32>
    %20 = vector.broadcast %2 : vector<1x32xf32> to vector<16x32xf32>
    %21 = arith.mulf %19, %20 : vector<16x32xf32>
    %22 = vector.broadcast %3 : vector<1x32xf32> to vector<16x32xf32>
    %23 = arith.addf %21, %22 : vector<16x32xf32>
    %c0_7 = arith.constant 0 : index
    %c0_8 = arith.constant 0 : index
    %24 = vector.load %arg1[%c0_7, %c0_8] : memref<16x16xf32, #tpu.memory_space<vmem>>, vector<16x16xf32>
    %c0_9 = arith.constant 0 : index
    %c0_10 = arith.constant 0 : index
    %c0_11 = arith.constant 0 : index
    %25 = vector.load %arg3[%c0_9, %c0_10, %c0_11] : memref<2x8x96xf32, #tpu.memory_space<vmem>>, vector<1x8x96xf32>
    %26 = vector.shape_cast %25 : vector<1x8x96xf32> to vector<8x96xf32>
    %c0_12 = arith.constant 0 : index
    %c0_13 = arith.constant 0 : index
    %c0_14 = arith.constant 0 : index
    %27 = vector.load %arg4[%c0_12, %c0_13, %c0_14] : memref<2x32x96xbf16, #tpu.memory_space<vmem>>, vector<1x32x96xbf16>
    %28 = vector.shape_cast %27 : vector<1x32x96xbf16> to vector<32x96xbf16>
    %29 = arith.truncf %23 : vector<16x32xf32> to vector<16x32xbf16>
    %cst_15 = arith.constant dense<0.000000e+00> : vector<16x96xf32>
    %30 = tpu.matmul %29, %28, %cst_15 {dimension_numbers = #tpu.dot_dimension_numbers<[1], [0], [0], [1], [0, 0, 1, 1], [], []>} : vector<16x32xbf16>, vector<32x96xbf16>, vector<16x96xf32> -> vector<16x96xf32>
    %31 = vector.extract_strided_slice %26 {offsets = [0, 0], sizes = [1, 96], strides = [1, 1]} : vector<8x96xf32> to vector<1x96xf32>
    %32 = vector.broadcast %31 : vector<1x96xf32> to vector<16x96xf32>
    %33 = arith.addf %30, %32 : vector<16x96xf32>
    %34 = vector.extract_strided_slice %33 {offsets = [0, 0], sizes = [16, 8], strides = [1, 1]} : vector<16x96xf32> to vector<16x8xf32>
    %35 = vector.extract_strided_slice %33 {offsets = [0, 8], sizes = [16, 8], strides = [1, 1]} : vector<16x96xf32> to vector<16x8xf32>
    %36 = vector.extract_strided_slice %33 {offsets = [0, 16], sizes = [16, 8], strides = [1, 1]} : vector<16x96xf32> to vector<16x8xf32>
    %37 = vector.extract_strided_slice %33 {offsets = [0, 24], sizes = [16, 8], strides = [1, 1]} : vector<16x96xf32> to vector<16x8xf32>
    %38 = vector.shape_cast %34 : vector<16x8xf32> to vector<1x16x8xf32>
    %39 = vector.shape_cast %35 : vector<16x8xf32> to vector<1x16x8xf32>
    %40 = vector.shape_cast %36 : vector<16x8xf32> to vector<1x16x8xf32>
    %41 = vector.shape_cast %37 : vector<16x8xf32> to vector<1x16x8xf32>
    %42 = tpu.concatenate %38, %39, %40, %41 in 0 : vector<1x16x8xf32>, vector<1x16x8xf32>, vector<1x16x8xf32>, vector<1x16x8xf32> -> vector<4x16x8xf32>
    %43 = arith.truncf %42 : vector<4x16x8xf32> to vector<4x16x8xbf16>
    %44 = vector.extract_strided_slice %33 {offsets = [0, 32], sizes = [16, 8], strides = [1, 1]} : vector<16x96xf32> to vector<16x8xf32>
    %45 = vector.extract_strided_slice %33 {offsets = [0, 40], sizes = [16, 8], strides = [1, 1]} : vector<16x96xf32> to vector<16x8xf32>
    %46 = vector.extract_strided_slice %33 {offsets = [0, 48], sizes = [16, 8], strides = [1, 1]} : vector<16x96xf32> to vector<16x8xf32>
    %47 = vector.extract_strided_slice %33 {offsets = [0, 56], sizes = [16, 8], strides = [1, 1]} : vector<16x96xf32> to vector<16x8xf32>
    %48 = vector.shape_cast %44 : vector<16x8xf32> to vector<1x16x8xf32>
    %49 = vector.shape_cast %45 : vector<16x8xf32> to vector<1x16x8xf32>
    %50 = vector.shape_cast %46 : vector<16x8xf32> to vector<1x16x8xf32>
    %51 = vector.shape_cast %47 : vector<16x8xf32> to vector<1x16x8xf32>
    %52 = tpu.concatenate %48, %49, %50, %51 in 0 : vector<1x16x8xf32>, vector<1x16x8xf32>, vector<1x16x8xf32>, vector<1x16x8xf32> -> vector<4x16x8xf32>
    %53 = arith.truncf %52 : vector<4x16x8xf32> to vector<4x16x8xbf16>
    %54 = vector.extract_strided_slice %33 {offsets = [0, 64], sizes = [16, 8], strides = [1, 1]} : vector<16x96xf32> to vector<16x8xf32>
    %55 = vector.extract_strided_slice %33 {offsets = [0, 72], sizes = [16, 8], strides = [1, 1]} : vector<16x96xf32> to vector<16x8xf32>
    %56 = vector.extract_strided_slice %33 {offsets = [0, 80], sizes = [16, 8], strides = [1, 1]} : vector<16x96xf32> to vector<16x8xf32>
    %57 = vector.extract_strided_slice %33 {offsets = [0, 88], sizes = [16, 8], strides = [1, 1]} : vector<16x96xf32> to vector<16x8xf32>
    %58 = vector.shape_cast %54 : vector<16x8xf32> to vector<1x16x8xf32>
    %59 = vector.shape_cast %55 : vector<16x8xf32> to vector<1x16x8xf32>
    %60 = vector.shape_cast %56 : vector<16x8xf32> to vector<1x16x8xf32>
    %61 = vector.shape_cast %57 : vector<16x8xf32> to vector<1x16x8xf32>
    %62 = tpu.concatenate %58, %59, %60, %61 in 0 : vector<1x16x8xf32>, vector<1x16x8xf32>, vector<1x16x8xf32>, vector<1x16x8xf32> -> vector<4x16x8xf32>
    %63 = arith.truncf %62 : vector<4x16x8xf32> to vector<4x16x8xbf16>
    "tpu.trace_start"() <{level = 10 : i32, message = "hqd,hkd->hqk"}> : () -> ()
    %cst_16 = arith.constant dense<0.000000e+00> : vector<4x16x16xf32>
    %64 = tpu.matmul %43, %53, %cst_16 {dimension_numbers = #tpu.dot_dimension_numbers<[2], [2], [1], [1], [0, 0, 0, 1, 1, 1], [0], [0]>} : vector<4x16x8xbf16>, vector<4x16x8xbf16>, vector<4x16x16xf32> -> vector<4x16x16xf32>
    "tpu.trace_stop"() : () -> ()
    %65 = vector.shape_cast %24 : vector<16x16xf32> to vector<1x16x16xf32>
    %66 = vector.broadcast %65 : vector<1x16x16xf32> to vector<4x16x16xf32>
    %67 = arith.addf %64, %66 : vector<4x16x16xf32>
    %cst_17 = arith.constant dense<0xFF800000> : vector<4x16xf32>
    %68 = vector.multi_reduction <maximumf>, %67, %cst_17 [2] : vector<4x16x16xf32> to vector<4x16xf32>
    %69 = vector.shape_cast %68 : vector<4x16xf32> to vector<4x16x1xf32>
    %70 = vector.broadcast %69 : vector<4x16x1xf32> to vector<4x16x16xf32>
    %71 = arith.subf %67, %70 : vector<4x16x16xf32>
    %72 = math.exp %71 : vector<4x16x16xf32>
    %cst_18 = arith.constant dense<0.000000e+00> : vector<4x16xf32>
    %73 = vector.multi_reduction <add>, %72, %cst_18 [2] : vector<4x16x16xf32> to vector<4x16xf32>
    %74 = vector.shape_cast %73 : vector<4x16xf32> to vector<4x16x1xf32>
    %75 = tpu.reciprocal %74 {approx = true} : vector<4x16x1xf32> -> vector<4x16x1xf32>
    %76 = arith.truncf %72 : vector<4x16x16xf32> to vector<4x16x16xbf16>
    "tpu.trace_start"() <{level = 10 : i32, message = "hqk,hkd->hqd"}> : () -> ()
    %cst_19 = arith.constant dense<0.000000e+00> : vector<4x16x8xf32>
    %77 = tpu.matmul %76, %63, %cst_19 {dimension_numbers = #tpu.dot_dimension_numbers<[2], [1], [1], [2], [0, 0, 0, 1, 1, 2], [0], [0]>} : vector<4x16x16xbf16>, vector<4x16x8xbf16>, vector<4x16x8xf32> -> vector<4x16x8xf32>
    "tpu.trace_stop"() : () -> ()
    %78 = vector.broadcast %75 : vector<4x16x1xf32> to vector<4x16x8xf32>
    %79 = arith.mulf %77, %78 : vector<4x16x8xf32>
    %80 = vector.extract_strided_slice %79 {offsets = [0, 0, 0], sizes = [1, 16, 8], strides = [1, 1, 1]} : vector<4x16x8xf32> to vector<1x16x8xf32>
    %81 = vector.shape_cast %80 : vector<1x16x8xf32> to vector<16x8xf32>
    %c0_20 = arith.constant 0 : index
    %c0_21 = arith.constant 0 : index
    %82 = vector.load %arg9[%c0_20, %c0_21] : memref<16x32xf32, #tpu.memory_space<vmem>>, vector<16x8xf32>
    tpu.vector_store %arg9[%c0_20, %c0_21], %81 {strides = array<i32>} : memref<16x32xf32, #tpu.memory_space<vmem>>, vector<16x8xf32>,
    %83 = vector.extract_strided_slice %79 {offsets = [1, 0, 0], sizes = [1, 16, 8], strides = [1, 1, 1]} : vector<4x16x8xf32> to vector<1x16x8xf32>
    %84 = vector.shape_cast %83 : vector<1x16x8xf32> to vector<16x8xf32>
    %c0_22 = arith.constant 0 : index
    %c8 = arith.constant 8 : index
    %85 = vector.load %arg9[%c0_22, %c8] : memref<16x32xf32, #tpu.memory_space<vmem>>, vector<16x8xf32>
    tpu.vector_store %arg9[%c0_22, %c8], %84 {strides = array<i32>} : memref<16x32xf32, #tpu.memory_space<vmem>>, vector<16x8xf32>,
    %86 = vector.extract_strided_slice %79 {offsets = [2, 0, 0], sizes = [1, 16, 8], strides = [1, 1, 1]} : vector<4x16x8xf32> to vector<1x16x8xf32>
    %87 = vector.shape_cast %86 : vector<1x16x8xf32> to vector<16x8xf32>
    %c0_23 = arith.constant 0 : index
    %c16 = arith.constant 16 : index
    %88 = vector.load %arg9[%c0_23, %c16] : memref<16x32xf32, #tpu.memory_space<vmem>>, vector<16x8xf32>
    tpu.vector_store %arg9[%c0_23, %c16], %87 {strides = array<i32>} : memref<16x32xf32, #tpu.memory_space<vmem>>, vector<16x8xf32>,
    %89 = vector.extract_strided_slice %79 {offsets = [3, 0, 0], sizes = [1, 16, 8], strides = [1, 1, 1]} : vector<4x16x8xf32> to vector<1x16x8xf32>
    %90 = vector.shape_cast %89 : vector<1x16x8xf32> to vector<16x8xf32>
    %c0_24 = arith.constant 0 : index
    %c24 = arith.constant 24 : index
    %91 = vector.load %arg9[%c0_24, %c24] : memref<16x32xf32, #tpu.memory_space<vmem>>, vector<16x8xf32>
    tpu.vector_store %arg9[%c0_24, %c24], %90 {strides = array<i32>} : memref<16x32xf32, #tpu.memory_space<vmem>>, vector<16x8xf32>,
    %c0_25 = arith.constant 0 : index
    %c0_26 = arith.constant 0 : index
    %92 = vector.load %arg9[%c0_25, %c0_26] : memref<16x32xf32, #tpu.memory_space<vmem>>, vector<16x32xf32>
    %c0_27 = arith.constant 0 : index
    %c0_28 = arith.constant 0 : index
    %c0_29 = arith.constant 0 : index
    %93 = vector.load %arg5[%c0_27, %c0_28, %c0_29] : memref<2x32x32xbf16, #tpu.memory_space<vmem>>, vector<1x32x32xbf16>
    %94 = vector.shape_cast %93 : vector<1x32x32xbf16> to vector<32x32xbf16>
    %95 = arith.truncf %92 : vector<16x32xf32> to vector<16x32xbf16>
    %cst_30 = arith.constant dense<0.000000e+00> : vector<16x32xf32>
    %96 = tpu.matmul %95, %94, %cst_30 {dimension_numbers = #tpu.dot_dimension_numbers<[1], [0], [0], [1], [0, 0, 1, 1], [], []>} : vector<16x32xbf16>, vector<32x32xbf16>, vector<16x32xf32> -> vector<16x32xf32>
    %97 = vector.extract_strided_slice %26 {offsets = [1, 0], sizes = [1, 32], strides = [1, 1]} : vector<8x96xf32> to vector<1x32xf32>
    %98 = vector.broadcast %97 : vector<1x32xf32> to vector<16x32xf32>
    %99 = arith.addf %96, %98 : vector<16x32xf32>
    %100 = arith.addf %99, %23 : vector<16x32xf32>
    %101 = vector.extract_strided_slice %26 {offsets = [2, 0], sizes = [1, 32], strides = [1, 1]} : vector<8x96xf32> to vector<1x32xf32>
    %102 = vector.extract_strided_slice %26 {offsets = [3, 0], sizes = [1, 32], strides = [1, 1]} : vector<8x96xf32> to vector<1x32xf32>
    %cst_31 = arith.constant dense<0.000000e+00> : vector<16xf32>
    %103 = vector.multi_reduction <add>, %100, %cst_31 [1] : vector<16x32xf32> to vector<16xf32>
    %104 = vector.shape_cast %103 : vector<16xf32> to vector<16x1xf32>
    %cst_32 = arith.constant 3.200000e+01 : f32
    %105 = vector.broadcast %cst_32 : f32 to vector<16x1xf32>
    %106 = arith.divf %104, %105 : vector<16x1xf32>
    %107 = vector.broadcast %106 : vector<16x1xf32> to vector<16x32xf32>
    %108 = arith.subf %100, %107 : vector<16x32xf32>
    %109 = arith.mulf %108, %108 : vector<16x32xf32>
    %cst_33 = arith.constant dense<0.000000e+00> : vector<16xf32>
    %110 = vector.multi_reduction <add>, %109, %cst_33 [1] : vector<16x32xf32> to vector<16xf32>
    %111 = vector.shape_cast %110 : vector<16xf32> to vector<16x1xf32>
    %cst_34 = arith.constant 3.200000e+01 : f32
    %112 = vector.broadcast %cst_34 : f32 to vector<16x1xf32>
    %113 = arith.divf %111, %112 : vector<16x1xf32>
    %cst_35 = arith.constant 9.99999996E-13 : f32
    %114 = vector.broadcast %cst_35 : f32 to vector<16x1xf32>
    %115 = arith.addf %113, %114 : vector<16x1xf32>
    %116 = math.rsqrt %115 : vector<16x1xf32>
    %117 = vector.broadcast %116 : vector<16x1xf32> to vector<16x32xf32>
    %118 = arith.mulf %108, %117 : vector<16x32xf32>
    %119 = vector.broadcast %101 : vector<1x32xf32> to vector<16x32xf32>
    %120 = arith.mulf %118, %119 : vector<16x32xf32>
    %121 = vector.broadcast %102 : vector<1x32xf32> to vector<16x32xf32>
    %122 = arith.addf %120, %121 : vector<16x32xf32>
    %c0_36 = arith.constant 0 : index
    %c0_37 = arith.constant 0 : index
    %c0_38 = arith.constant 0 : index
    %123 = vector.load %arg6[%c0_36, %c0_37, %c0_38] : memref<2x32x64xbf16, #tpu.memory_space<vmem>>, vector<1x32x64xbf16>
    %124 = vector.shape_cast %123 : vector<1x32x64xbf16> to vector<32x64xbf16>
    %125 = arith.truncf %122 : vector<16x32xf32> to vector<16x32xbf16>
    %cst_39 = arith.constant dense<0.000000e+00> : vector<16x64xf32>
    %126 = tpu.matmul %125, %124, %cst_39 {dimension_numbers = #tpu.dot_dimension_numbers<[1], [0], [0], [1], [0, 0, 1, 1], [], []>} : vector<16x32xbf16>, vector<32x64xbf16>, vector<16x64xf32> -> vector<16x64xf32>
    %127 = vector.extract_strided_slice %26 {offsets = [4, 0], sizes = [1, 64], strides = [1, 1]} : vector<8x96xf32> to vector<1x64xf32>
    %128 = vector.broadcast %127 : vector<1x64xf32> to vector<16x64xf32>
    %129 = arith.addf %126, %128 : vector<16x64xf32>
    %cst_40 = arith.constant 5.000000e-01 : f32
    %130 = vector.broadcast %cst_40 : f32 to vector<16x64xf32>
    %131 = arith.mulf %130, %129 : vector<16x64xf32>
    %cst_41 = arith.constant 4.471500e-02 : f32
    %132 = vector.broadcast %cst_41 : f32 to vector<16x64xf32>
    %133 = arith.mulf %132, %129 : vector<16x64xf32>
    %134 = arith.mulf %133, %129 : vector<16x64xf32>
    %135 = arith.mulf %134, %129 : vector<16x64xf32>
    %136 = arith.addf %129, %135 : vector<16x64xf32>
    %cst_42 = arith.constant 0.797884583 : f32
    %137 = vector.broadcast %cst_42 : f32 to vector<16x64xf32>
    %138 = arith.mulf %137, %136 : vector<16x64xf32>
    %139 = math.tanh %138 : vector<16x64xf32>
    %cst_43 = arith.constant 1.000000e+00 : f32
    %140 = vector.broadcast %cst_43 : f32 to vector<16x64xf32>
    %141 = arith.addf %140, %139 : vector<16x64xf32>
    %142 = arith.mulf %131, %141 : vector<16x64xf32>
    %c0_44 = arith.constant 0 : index
    %c0_45 = arith.constant 0 : index
    %c0_46 = arith.constant 0 : index
    %143 = vector.load %arg7[%c0_44, %c0_45, %c0_46] : memref<2x64x32xbf16, #tpu.memory_space<vmem>>, vector<1x64x32xbf16>
    %144 = vector.shape_cast %143 : vector<1x64x32xbf16> to vector<64x32xbf16>
    %145 = arith.truncf %142 : vector<16x64xf32> to vector<16x64xbf16>
    %cst_47 = arith.constant dense<0.000000e+00> : vector<16x32xf32>
    %146 = tpu.matmul %145, %144, %cst_47 {dimension_numbers = #tpu.dot_dimension_numbers<[1], [0], [0], [1], [0, 0, 1, 1], [], []>} : vector<16x64xbf16>, vector<64x32xbf16>, vector<16x32xf32> -> vector<16x32xf32>
    %147 = vector.extract_strided_slice %26 {offsets = [5, 0], sizes = [1, 32], strides = [1, 1]} : vector<8x96xf32> to vector<1x32xf32>
    %148 = vector.broadcast %147 : vector<1x32xf32> to vector<16x32xf32>
    %149 = arith.addf %146, %148 : vector<16x32xf32>
    %150 = arith.addf %149, %122 : vector<16x32xf32>
    %151 = vector.extract_strided_slice %26 {offsets = [6, 0], sizes = [1, 32], strides = [1, 1]} : vector<8x96xf32> to vector<1x32xf32>
    %152 = vector.extract_strided_slice %26 {offsets = [7, 0], sizes = [1, 32], strides = [1, 1]} : vector<8x96xf32> to vector<1x32xf32>
    %cst_48 = arith.constant dense<0.000000e+00> : vector<16xf32>
    %153 = vector.multi_reduction <add>, %150, %cst_48 [1] : vector<16x32xf32> to vector<16xf32>
    %154 = vector.shape_cast %153 : vector<16xf32> to vector<16x1xf32>
    %cst_49 = arith.constant 3.200000e+01 : f32
    %155 = vector.broadcast %cst_49 : f32 to vector<16x1xf32>
    %156 = arith.divf %154, %155 : vector<16x1xf32>
    %157 = vector.broadcast %156 : vector<16x1xf32> to vector<16x32xf32>
    %158 = arith.subf %150, %157 : vector<16x32xf32>
    %159 = arith.mulf %158, %158 : vector<16x32xf32>
    %cst_50 = arith.constant dense<0.000000e+00> : vector<16xf32>
    %160 = vector.multi_reduction <add>, %159, %cst_50 [1] : vector<16x32xf32> to vector<16xf32>
    %161 = vector.shape_cast %160 : vector<16xf32> to vector<16x1xf32>
    %cst_51 = arith.constant 3.200000e+01 : f32
    %162 = vector.broadcast %cst_51 : f32 to vector<16x1xf32>
    %163 = arith.divf %161, %162 : vector<16x1xf32>
    %cst_52 = arith.constant 9.99999996E-13 : f32
    %164 = vector.broadcast %cst_52 : f32 to vector<16x1xf32>
    %165 = arith.addf %163, %164 : vector<16x1xf32>
    %166 = math.rsqrt %165 : vector<16x1xf32>
    %167 = vector.broadcast %166 : vector<16x1xf32> to vector<16x32xf32>
    %168 = arith.mulf %158, %167 : vector<16x32xf32>
    %169 = vector.broadcast %151 : vector<1x32xf32> to vector<16x32xf32>
    %170 = arith.mulf %168, %169 : vector<16x32xf32>
    %171 = vector.broadcast %152 : vector<1x32xf32> to vector<16x32xf32>
    %172 = arith.addf %170, %171 : vector<16x32xf32>
    %c1 = arith.constant 1 : index
    %c0_53 = arith.constant 0 : index
    %c0_54 = arith.constant 0 : index
    %173 = vector.load %arg3[%c1, %c0_53, %c0_54] : memref<2x8x96xf32, #tpu.memory_space<vmem>>, vector<1x8x96xf32>
    %174 = vector.shape_cast %173 : vector<1x8x96xf32> to vector<8x96xf32>
    %c1_55 = arith.constant 1 : index
    %c0_56 = arith.constant 0 : index
    %c0_57 = arith.constant 0 : index
    %175 = vector.load %arg4[%c1_55, %c0_56, %c0_57] : memref<2x32x96xbf16, #tpu.memory_space<vmem>>, vector<1x32x96xbf16>
    %176 = vector.shape_cast %175 : vector<1x32x96xbf16> to vector<32x96xbf16>
    %177 = arith.truncf %172 : vector<16x32xf32> to vector<16x32xbf16>
    %cst_58 = arith.constant dense<0.000000e+00> : vector<16x96xf32>
    %178 = tpu.matmul %177, %176, %cst_58 {dimension_numbers = #tpu.dot_dimension_numbers<[1], [0], [0], [1], [0, 0, 1, 1], [], []>} : vector<16x32xbf16>, vector<32x96xbf16>, vector<16x96xf32> -> vector<16x96xf32>
    %179 = vector.extract_strided_slice %174 {offsets = [0, 0], sizes = [1, 96], strides = [1, 1]} : vector<8x96xf32> to vector<1x96xf32>
    %180 = vector.broadcast %179 : vector<1x96xf32> to vector<16x96xf32>
    %181 = arith.addf %178, %180 : vector<16x96xf32>
    %182 = vector.extract_strided_slice %181 {offsets = [0, 0], sizes = [16, 8], strides = [1, 1]} : vector<16x96xf32> to vector<16x8xf32>
    %183 = vector.extract_strided_slice %181 {offsets = [0, 8], sizes = [16, 8], strides = [1, 1]} : vector<16x96xf32> to vector<16x8xf32>
    %184 = vector.extract_strided_slice %181 {offsets = [0, 16], sizes = [16, 8], strides = [1, 1]} : vector<16x96xf32> to vector<16x8xf32>
    %185 = vector.extract_strided_slice %181 {offsets = [0, 24], sizes = [16, 8], strides = [1, 1]} : vector<16x96xf32> to vector<16x8xf32>
    %186 = vector.shape_cast %182 : vector<16x8xf32> to vector<1x16x8xf32>
    %187 = vector.shape_cast %183 : vector<16x8xf32> to vector<1x16x8xf32>
    %188 = vector.shape_cast %184 : vector<16x8xf32> to vector<1x16x8xf32>
    %189 = vector.shape_cast %185 : vector<16x8xf32> to vector<1x16x8xf32>
    %190 = tpu.concatenate %186, %187, %188, %189 in 0 : vector<1x16x8xf32>, vector<1x16x8xf32>, vector<1x16x8xf32>, vector<1x16x8xf32> -> vector<4x16x8xf32>
    %191 = arith.truncf %190 : vector<4x16x8xf32> to vector<4x16x8xbf16>
    %192 = vector.extract_strided_slice %181 {offsets = [0, 32], sizes = [16, 8], strides = [1, 1]} : vector<16x96xf32> to vector<16x8xf32>
    %193 = vector.extract_strided_slice %181 {offsets = [0, 40], sizes = [16, 8], strides = [1, 1]} : vector<16x96xf32> to vector<16x8xf32>
    %194 = vector.extract_strided_slice %181 {offsets = [0, 48], sizes = [16, 8], strides = [1, 1]} : vector<16x96xf32> to vector<16x8xf32>
    %195 = vector.extract_strided_slice %181 {offsets = [0, 56], sizes = [16, 8], strides = [1, 1]} : vector<16x96xf32> to vector<16x8xf32>
    %196 = vector.shape_cast %192 : vector<16x8xf32> to vector<1x16x8xf32>
    %197 = vector.shape_cast %193 : vector<16x8xf32> to vector<1x16x8xf32>
    %198 = vector.shape_cast %194 : vector<16x8xf32> to vector<1x16x8xf32>
    %199 = vector.shape_cast %195 : vector<16x8xf32> to vector<1x16x8xf32>
    %200 = tpu.concatenate %196, %197, %198, %199 in 0 : vector<1x16x8xf32>, vector<1x16x8xf32>, vector<1x16x8xf32>, vector<1x16x8xf32> -> vector<4x16x8xf32>
    %201 = arith.truncf %200 : vector<4x16x8xf32> to vector<4x16x8xbf16>
    %202 = vector.extract_strided_slice %181 {offsets = [0, 64], sizes = [16, 8], strides = [1, 1]} : vector<16x96xf32> to vector<16x8xf32>
    %203 = vector.extract_strided_slice %181 {offsets = [0, 72], sizes = [16, 8], strides = [1, 1]} : vector<16x96xf32> to vector<16x8xf32>
    %204 = vector.extract_strided_slice %181 {offsets = [0, 80], sizes = [16, 8], strides = [1, 1]} : vector<16x96xf32> to vector<16x8xf32>
    %205 = vector.extract_strided_slice %181 {offsets = [0, 88], sizes = [16, 8], strides = [1, 1]} : vector<16x96xf32> to vector<16x8xf32>
    %206 = vector.shape_cast %202 : vector<16x8xf32> to vector<1x16x8xf32>
    %207 = vector.shape_cast %203 : vector<16x8xf32> to vector<1x16x8xf32>
    %208 = vector.shape_cast %204 : vector<16x8xf32> to vector<1x16x8xf32>
    %209 = vector.shape_cast %205 : vector<16x8xf32> to vector<1x16x8xf32>
    %210 = tpu.concatenate %206, %207, %208, %209 in 0 : vector<1x16x8xf32>, vector<1x16x8xf32>, vector<1x16x8xf32>, vector<1x16x8xf32> -> vector<4x16x8xf32>
    %211 = arith.truncf %210 : vector<4x16x8xf32> to vector<4x16x8xbf16>
    "tpu.trace_start"() <{level = 10 : i32, message = "hqd,hkd->hqk"}> : () -> ()
    %cst_59 = arith.constant dense<0.000000e+00> : vector<4x16x16xf32>
    %212 = tpu.matmul %191, %201, %cst_59 {dimension_numbers = #tpu.dot_dimension_numbers<[2], [2], [1], [1], [0, 0, 0, 1, 1, 1], [0], [0]>} : vector<4x16x8xbf16>, vector<4x16x8xbf16>, vector<4x16x16xf32> -> vector<4x16x16xf32>
    "tpu.trace_stop"() : () -> ()
    %213 = vector.shape_cast %24 : vector<16x16xf32> to vector<1x16x16xf32>
    %214 = vector.broadcast %213 : vector<1x16x16xf32> to vector<4x16x16xf32>
    %215 = arith.addf %212, %214 : vector<4x16x16xf32>
    %cst_60 = arith.constant dense<0xFF800000> : vector<4x16xf32>
    %216 = vector.multi_reduction <maximumf>, %215, %cst_60 [2] : vector<4x16x16xf32> to vector<4x16xf32>
    %217 = vector.shape_cast %216 : vector<4x16xf32> to vector<4x16x1xf32>
    %218 = vector.broadcast %217 : vector<4x16x1xf32> to vector<4x16x16xf32>
    %219 = arith.subf %215, %218 : vector<4x16x16xf32>
    %220 = math.exp %219 : vector<4x16x16xf32>
    %cst_61 = arith.constant dense<0.000000e+00> : vector<4x16xf32>
    %221 = vector.multi_reduction <add>, %220, %cst_61 [2] : vector<4x16x16xf32> to vector<4x16xf32>
    %222 = vector.shape_cast %221 : vector<4x16xf32> to vector<4x16x1xf32>
    %223 = tpu.reciprocal %222 {approx = true} : vector<4x16x1xf32> -> vector<4x16x1xf32>
    %224 = arith.truncf %220 : vector<4x16x16xf32> to vector<4x16x16xbf16>
    "tpu.trace_start"() <{level = 10 : i32, message = "hqk,hkd->hqd"}> : () -> ()
    %cst_62 = arith.constant dense<0.000000e+00> : vector<4x16x8xf32>
    %225 = tpu.matmul %224, %211, %cst_62 {dimension_numbers = #tpu.dot_dimension_numbers<[2], [1], [1], [2], [0, 0, 0, 1, 1, 2], [0], [0]>} : vector<4x16x16xbf16>, vector<4x16x8xbf16>, vector<4x16x8xf32> -> vector<4x16x8xf32>
    "tpu.trace_stop"() : () -> ()
    %226 = vector.broadcast %223 : vector<4x16x1xf32> to vector<4x16x8xf32>
    %227 = arith.mulf %225, %226 : vector<4x16x8xf32>
    %228 = vector.extract_strided_slice %227 {offsets = [0, 0, 0], sizes = [1, 16, 8], strides = [1, 1, 1]} : vector<4x16x8xf32> to vector<1x16x8xf32>
    %229 = vector.shape_cast %228 : vector<1x16x8xf32> to vector<16x8xf32>
    %c0_63 = arith.constant 0 : index
    %c0_64 = arith.constant 0 : index
    %230 = vector.load %arg9[%c0_63, %c0_64] : memref<16x32xf32, #tpu.memory_space<vmem>>, vector<16x8xf32>
    tpu.vector_store %arg9[%c0_63, %c0_64], %229 {strides = array<i32>} : memref<16x32xf32, #tpu.memory_space<vmem>>, vector<16x8xf32>,
    %231 = vector.extract_strided_slice %227 {offsets = [1, 0, 0], sizes = [1, 16, 8], strides = [1, 1, 1]} : vector<4x16x8xf32> to vector<1x16x8xf32>
    %232 = vector.shape_cast %231 : vector<1x16x8xf32> to vector<16x8xf32>
    %c0_65 = arith.constant 0 : index
    %c8_66 = arith.constant 8 : index
    %233 = vector.load %arg9[%c0_65, %c8_66] : memref<16x32xf32, #tpu.memory_space<vmem>>, vector<16x8xf32>
    tpu.vector_store %arg9[%c0_65, %c8_66], %232 {strides = array<i32>} : memref<16x32xf32, #tpu.memory_space<vmem>>, vector<16x8xf32>,
    %234 = vector.extract_strided_slice %227 {offsets = [2, 0, 0], sizes = [1, 16, 8], strides = [1, 1, 1]} : vector<4x16x8xf32> to vector<1x16x8xf32>
    %235 = vector.shape_cast %234 : vector<1x16x8xf32> to vector<16x8xf32>
    %c0_67 = arith.constant 0 : index
    %c16_68 = arith.constant 16 : index
    %236 = vector.load %arg9[%c0_67, %c16_68] : memref<16x32xf32, #tpu.memory_space<vmem>>, vector<16x8xf32>
    tpu.vector_store %arg9[%c0_67, %c16_68], %235 {strides = array<i32>} : memref<16x32xf32, #tpu.memory_space<vmem>>, vector<16x8xf32>,
    %237 = vector.extract_strided_slice %227 {offsets = [3, 0, 0], sizes = [1, 16, 8], strides = [1, 1, 1]} : vector<4x16x8xf32> to vector<1x16x8xf32>
    %238 = vector.shape_cast %237 : vector<1x16x8xf32> to vector<16x8xf32>
    %c0_69 = arith.constant 0 : index
    %c24_70 = arith.constant 24 : index
    %239 = vector.load %arg9[%c0_69, %c24_70] : memref<16x32xf32, #tpu.memory_space<vmem>>, vector<16x8xf32>
    tpu.vector_store %arg9[%c0_69, %c24_70], %238 {strides = array<i32>} : memref<16x32xf32, #tpu.memory_space<vmem>>, vector<16x8xf32>,
    %c0_71 = arith.constant 0 : index
    %c0_72 = arith.constant 0 : index
    %240 = vector.load %arg9[%c0_71, %c0_72] : memref<16x32xf32, #tpu.memory_space<vmem>>, vector<16x32xf32>
    %c1_73 = arith.constant 1 : index
    %c0_74 = arith.constant 0 : index
    %c0_75 = arith.constant 0 : index
    %241 = vector.load %arg5[%c1_73, %c0_74, %c0_75] : memref<2x32x32xbf16, #tpu.memory_space<vmem>>, vector<1x32x32xbf16>
    %242 = vector.shape_cast %241 : vector<1x32x32xbf16> to vector<32x32xbf16>
    %243 = arith.truncf %240 : vector<16x32xf32> to vector<16x32xbf16>
    %cst_76 = arith.constant dense<0.000000e+00> : vector<16x32xf32>
    %244 = tpu.matmul %243, %242, %cst_76 {dimension_numbers = #tpu.dot_dimension_numbers<[1], [0], [0], [1], [0, 0, 1, 1], [], []>} : vector<16x32xbf16>, vector<32x32xbf16>, vector<16x32xf32> -> vector<16x32xf32>
    %245 = vector.extract_strided_slice %174 {offsets = [1, 0], sizes = [1, 32], strides = [1, 1]} : vector<8x96xf32> to vector<1x32xf32>
    %246 = vector.broadcast %245 : vector<1x32xf32> to vector<16x32xf32>
    %247 = arith.addf %244, %246 : vector<16x32xf32>
    %248 = arith.addf %247, %172 : vector<16x32xf32>
    %249 = vector.extract_strided_slice %174 {offsets = [2, 0], sizes = [1, 32], strides = [1, 1]} : vector<8x96xf32> to vector<1x32xf32>
    %250 = vector.extract_strided_slice %174 {offsets = [3, 0], sizes = [1, 32], strides = [1, 1]} : vector<8x96xf32> to vector<1x32xf32>
    %cst_77 = arith.constant dense<0.000000e+00> : vector<16xf32>
    %251 = vector.multi_reduction <add>, %248, %cst_77 [1] : vector<16x32xf32> to vector<16xf32>
    %252 = vector.shape_cast %251 : vector<16xf32> to vector<16x1xf32>
    %cst_78 = arith.constant 3.200000e+01 : f32
    %253 = vector.broadcast %cst_78 : f32 to vector<16x1xf32>
    %254 = arith.divf %252, %253 : vector<16x1xf32>
    %255 = vector.broadcast %254 : vector<16x1xf32> to vector<16x32xf32>
    %256 = arith.subf %248, %255 : vector<16x32xf32>
    %257 = arith.mulf %256, %256 : vector<16x32xf32>
    %cst_79 = arith.constant dense<0.000000e+00> : vector<16xf32>
    %258 = vector.multi_reduction <add>, %257, %cst_79 [1] : vector<16x32xf32> to vector<16xf32>
    %259 = vector.shape_cast %258 : vector<16xf32> to vector<16x1xf32>
    %cst_80 = arith.constant 3.200000e+01 : f32
    %260 = vector.broadcast %cst_80 : f32 to vector<16x1xf32>
    %261 = arith.divf %259, %260 : vector<16x1xf32>
    %cst_81 = arith.constant 9.99999996E-13 : f32
    %262 = vector.broadcast %cst_81 : f32 to vector<16x1xf32>
    %263 = arith.addf %261, %262 : vector<16x1xf32>
    %264 = math.rsqrt %263 : vector<16x1xf32>
    %265 = vector.broadcast %264 : vector<16x1xf32> to vector<16x32xf32>
    %266 = arith.mulf %256, %265 : vector<16x32xf32>
    %267 = vector.broadcast %249 : vector<1x32xf32> to vector<16x32xf32>
    %268 = arith.mulf %266, %267 : vector<16x32xf32>
    %269 = vector.broadcast %250 : vector<1x32xf32> to vector<16x32xf32>
    %270 = arith.addf %268, %269 : vector<16x32xf32>
    %c1_82 = arith.constant 1 : index
    %c0_83 = arith.constant 0 : index
    %c0_84 = arith.constant 0 : index
    %271 = vector.load %arg6[%c1_82, %c0_83, %c0_84] : memref<2x32x64xbf16, #tpu.memory_space<vmem>>, vector<1x32x64xbf16>
    %272 = vector.shape_cast %271 : vector<1x32x64xbf16> to vector<32x64xbf16>
    %273 = arith.truncf %270 : vector<16x32xf32> to vector<16x32xbf16>
    %cst_85 = arith.constant dense<0.000000e+00> : vector<16x64xf32>
    %274 = tpu.matmul %273, %272, %cst_85 {dimension_numbers = #tpu.dot_dimension_numbers<[1], [0], [0], [1], [0, 0, 1, 1], [], []>} : vector<16x32xbf16>, vector<32x64xbf16>, vector<16x64xf32> -> vector<16x64xf32>
    %275 = vector.extract_strided_slice %174 {offsets = [4, 0], sizes = [1, 64], strides = [1, 1]} : vector<8x96xf32> to vector<1x64xf32>
    %276 = vector.broadcast %275 : vector<1x64xf32> to vector<16x64xf32>
    %277 = arith.addf %274, %276 : vector<16x64xf32>
    %cst_86 = arith.constant 5.000000e-01 : f32
    %278 = vector.broadcast %cst_86 : f32 to vector<16x64xf32>
    %279 = arith.mulf %278, %277 : vector<16x64xf32>
    %cst_87 = arith.constant 4.471500e-02 : f32
    %280 = vector.broadcast %cst_87 : f32 to vector<16x64xf32>
    %281 = arith.mulf %280, %277 : vector<16x64xf32>
    %282 = arith.mulf %281, %277 : vector<16x64xf32>
    %283 = arith.mulf %282, %277 : vector<16x64xf32>
    %284 = arith.addf %277, %283 : vector<16x64xf32>
    %cst_88 = arith.constant 0.797884583 : f32
    %285 = vector.broadcast %cst_88 : f32 to vector<16x64xf32>
    %286 = arith.mulf %285, %284 : vector<16x64xf32>
    %287 = math.tanh %286 : vector<16x64xf32>
    %cst_89 = arith.constant 1.000000e+00 : f32
    %288 = vector.broadcast %cst_89 : f32 to vector<16x64xf32>
    %289 = arith.addf %288, %287 : vector<16x64xf32>
    %290 = arith.mulf %279, %289 : vector<16x64xf32>
    %c1_90 = arith.constant 1 : index
    %c0_91 = arith.constant 0 : index
    %c0_92 = arith.constant 0 : index
    %291 = vector.load %arg7[%c1_90, %c0_91, %c0_92] : memref<2x64x32xbf16, #tpu.memory_space<vmem>>, vector<1x64x32xbf16>
    %292 = vector.shape_cast %291 : vector<1x64x32xbf16> to vector<64x32xbf16>
    %293 = arith.truncf %290 : vector<16x64xf32> to vector<16x64xbf16>
    %cst_93 = arith.constant dense<0.000000e+00> : vector<16x32xf32>
    %294 = tpu.matmul %293, %292, %cst_93 {dimension_numbers = #tpu.dot_dimension_numbers<[1], [0], [0], [1], [0, 0, 1, 1], [], []>} : vector<16x64xbf16>, vector<64x32xbf16>, vector<16x32xf32> -> vector<16x32xf32>
    %295 = vector.extract_strided_slice %174 {offsets = [5, 0], sizes = [1, 32], strides = [1, 1]} : vector<8x96xf32> to vector<1x32xf32>
    %296 = vector.broadcast %295 : vector<1x32xf32> to vector<16x32xf32>
    %297 = arith.addf %294, %296 : vector<16x32xf32>
    %298 = arith.addf %297, %270 : vector<16x32xf32>
    %299 = vector.extract_strided_slice %174 {offsets = [6, 0], sizes = [1, 32], strides = [1, 1]} : vector<8x96xf32> to vector<1x32xf32>
    %300 = vector.extract_strided_slice %174 {offsets = [7, 0], sizes = [1, 32], strides = [1, 1]} : vector<8x96xf32> to vector<1x32xf32>
    %cst_94 = arith.constant dense<0.000000e+00> : vector<16xf32>
    %301 = vector.multi_reduction <add>, %298, %cst_94 [1] : vector<16x32xf32> to vector<16xf32>
    %302 = vector.shape_cast %301 : vector<16xf32> to vector<16x1xf32>
    %cst_95 = arith.constant 3.200000e+01 : f32
    %303 = vector.broadcast %cst_95 : f32 to vector<16x1xf32>
    %304 = arith.divf %302, %303 : vector<16x1xf32>
    %305 = vector.broadcast %304 : vector<16x1xf32> to vector<16x32xf32>
    %306 = arith.subf %298, %305 : vector<16x32xf32>
    %307 = arith.mulf %306, %306 : vector<16x32xf32>
    %cst_96 = arith.constant dense<0.000000e+00> : vector<16xf32>
    %308 = vector.multi_reduction <add>, %307, %cst_96 [1] : vector<16x32xf32> to vector<16xf32>
    %309 = vector.shape_cast %308 : vector<16xf32> to vector<16x1xf32>
    %cst_97 = arith.constant 3.200000e+01 : f32
    %310 = vector.broadcast %cst_97 : f32 to vector<16x1xf32>
    %311 = arith.divf %309, %310 : vector<16x1xf32>
    %cst_98 = arith.constant 9.99999996E-13 : f32
    %312 = vector.broadcast %cst_98 : f32 to vector<16x1xf32>
    %313 = arith.addf %311, %312 : vector<16x1xf32>
    %314 = math.rsqrt %313 : vector<16x1xf32>
    %315 = vector.broadcast %314 : vector<16x1xf32> to vector<16x32xf32>
    %316 = arith.mulf %306, %315 : vector<16x32xf32>
    %317 = vector.broadcast %299 : vector<1x32xf32> to vector<16x32xf32>
    %318 = arith.mulf %316, %317 : vector<16x32xf32>
    %319 = vector.broadcast %300 : vector<1x32xf32> to vector<16x32xf32>
    %320 = arith.addf %318, %319 : vector<16x32xf32>
    %321 = vector.extract_strided_slice %0 {offsets = [2, 0], sizes = [2, 32], strides = [1, 1]} : vector<6x32xf32> to vector<2x32xf32>
    %322 = arith.truncf %321 : vector<2x32xf32> to vector<2x32xbf16>
    %323 = vector.extract_strided_slice %0 {offsets = [4, 0], sizes = [2, 1], strides = [1, 1]} : vector<6x32xf32> to vector<2x1xf32>
    %324 = arith.truncf %320 : vector<16x32xf32> to vector<16x32xbf16>
    %cst_99 = arith.constant dense<0.000000e+00> : vector<2x16xf32>
    %325 = tpu.matmul %322, %324, %cst_99 {dimension_numbers = #tpu.dot_dimension_numbers<[1], [1], [0], [0], [0, 0, 1, 0], [], []>} : vector<2x32xbf16>, vector<16x32xbf16>, vector<2x16xf32> -> vector<2x16xf32>
    %326 = vector.broadcast %323 : vector<2x1xf32> to vector<2x16xf32>
    %327 = arith.addf %325, %326 : vector<2x16xf32>
    %c0_100 = arith.constant 0 : index
    %c0_101 = arith.constant 0 : index
    %328 = vector.load %arg8[%c0_100, %c0_101] : memref<2x16xf32, #tpu.memory_space<vmem>>, vector<2x16xf32>
    tpu.vector_store %arg8[%c0_100, %c0_101], %327 {strides = array<i32>} : memref<2x16xf32, #tpu.memory_space<vmem>>, vector<2x16xf32>,
    return
  }
}

</mosaic_0001>

<llo_original>
// kernel: squeeze.2
$region0: #{squeeze.2}
  %s0 = inlined_call_operand.vmem [shape: f32[16], index: 0, kind: input, shape index: {}]
  %s1 = inlined_call_operand.hbm [shape: f32[2,8], index: 1, kind: output, shape index: {}]
  $region1: #{squeeze.2} parent=0
    #allocation0 [shape = 'u8[1024]{0}', space=vmem, size = 0x400, scoped, tag = 'operand span for operand 1']
    #allocation1 [shape = 's32[1]{0}', space=sflag, size = 0x4, scoped, tag = 'scoped memory for squeeze.2']
    #allocation2 [shape = 'u8[4096]{0}', space=vmem, size = 0x1000, scoped, tag = 'scoped mem for output reshape']
    #allocation3 [shape = 'u8[4096]{0}', space=vmem, size = 0x1000, scoped, tag = 'scoped mem for input reshape']
    %2 = vsyncpa [#allocation1], 0
    %s4 = sshll.u32 1, 1
    %s5 = ssub.s32 %s4, 1
    %v6 = vld [vmem:[%s0] sm:%s5]
    %7 = vst [vmem:[#allocation3] sm:%s5] %v6
    %v8 = vld [vmem:[#allocation3] sm:$0x1]
    %vm9 = vcmask 64512
    %10 = vst.msk [vmem:[#allocation2] sm:$0x1] %vm9, %v8
    %v11 = vld [vmem:[#allocation3] sm:$0x1]
    %12 = vrot.lane.b32.xlu0 %v11, 120
    %v13 = vpop.permute.xlu0 %12
    %vm14 = vcmask 64512
    %s15 = scalar_lea.vmem [#allocation2], 1
    %16 = vst.msk [vmem:[%s15] sm:$0x1] %vm14, %v13
    %s18 = sshll.u32 1, 2
    %s19 = ssub.s32 %s18, 1
    %v21 = vld [vmem:[#allocation2] sm:%s19]
    %s22 = sshll.u32 1, 2
    %s23 = ssub.s32 %s22, 1
    %24 = vst [vmem:[#allocation0] sm:%s23] %v21
    %s26 = ssub.s32 32, 32
    %27 = vsyncadd [#allocation1], %s26
    %s29 = sshll.u32 [#allocation0], 4
    %s30 = int_to_ptr.vmem [resolvable:$true] %s29
    %32 = dma.vmem_to_hbm [thread:$0]  %s30, 32, %s1, [#allocation1]
    %33 = dma.done [#allocation1], 32
    %34 = vsyncpa [#allocation1], 1

// kernel: cre_forward.1
$region0: #{cre_forward.1}
  #allocation0 [shape = 'u32[]', space=smem, size = 0x4, offset = 0x4, fixed_abs, tag = 'smem constant byte address 0x4 - core index']
  #allocation1 [shape = 'u32[144,128]{1,0:T(1,128)}', space=vmem, size = 0x12000, scoped, tag = 'internal scratch']
  #allocation2 [shape = 'f32[16,32]{1,0:T(8,128)}', space=vmem, size = 0x2000, scoped, tag = 'scratch operand']
  %s0 = inlined_call_operand.vmem [shape: f32[16,32], index: 0, kind: input, shape index: {}]
  %s1 = inlined_call_operand.vmem [shape: f32[16,16], index: 1, kind: input, shape index: {}]
  %s2 = inlined_call_operand.vmem [shape: f32[6,32], index: 2, kind: input, shape index: {}]
  %s3 = inlined_call_operand.vmem [shape: f32[2,8,96], index: 3, kind: input, shape index: {}]
  %s4 = inlined_call_operand.vmem [shape: bf16[2,32,96], index: 4, kind: input, shape index: {}]
  %s5 = inlined_call_operand.vmem [shape: bf16[2,32,32], index: 5, kind: input, shape index: {}]
  %s6 = inlined_call_operand.vmem [shape: bf16[2,32,64], index: 6, kind: input, shape index: {}]
  %s7 = inlined_call_operand.vmem [shape: bf16[2,64,32], index: 7, kind: input, shape index: {}]
  %s8 = inlined_call_operand.vmem [shape: f32[2,16], index: 8, kind: output, shape index: {}]
  %s9 = sld [smem:[#allocation0]]
  $region42: #{cre_forward.1} parent=0
    _
  %s11 = ssub.s32 1, %s9
  %s12 = scalar_select 0, %s11, %s9
  // Predicated region
  $region2: #{cre_forward.1} parent=0 // pred_check
    _
  $region3: #{cre_forward.1} parent=0 // pred_check_branch
    %14 = sbr.rel (0) target = $region5
  $region4: #{cre_forward.1} parent=0 // pred_region
    _
  $region5: #{cre_forward.1} parent=0 // pred_fallthru
    _
  // Predicated region
  $region6: #{cre_forward.1} parent=0 // pred_check
    _
  $region7: #{cre_forward.1} parent=0 // pred_check_branch
    %16 = sbr.rel (0) target = $region9
  $region8: #{cre_forward.1} parent=0 // pred_region
    _
  $region9: #{cre_forward.1} parent=0 // pred_fallthru
    _
  // Predicated region
  $region10: #{cre_forward.1} parent=0 // pred_check
    _
  $region11: #{cre_forward.1} parent=0 // pred_check_branch
    %18 = sbr.rel (0) target = $region13
  $region12: #{cre_forward.1} parent=0 // pred_region
    _
  $region13: #{cre_forward.1} parent=0 // pred_fallthru
    _
  // Predicated region
  $region14: #{cre_forward.1} parent=0 // pred_check
    _
  $region15: #{cre_forward.1} parent=0 // pred_check_branch
    %20 = sbr.rel (0) target = $region17
  $region16: #{cre_forward.1} parent=0 // pred_region
    _
  $region17: #{cre_forward.1} parent=0 // pred_fallthru
    _
  // Predicated region
  $region18: #{cre_forward.1} parent=0 // pred_check
    _
  $region19: #{cre_forward.1} parent=0 // pred_check_branch
    %22 = sbr.rel (0) target = $region21
  $region20: #{cre_forward.1} parent=0 // pred_region
    _
  $region21: #{cre_forward.1} parent=0 // pred_fallthru
    _
  // Predicated region
  $region22: #{cre_forward.1} parent=0 // pred_check
    _
  $region23: #{cre_forward.1} parent=0 // pred_check_branch
    %24 = sbr.rel (0) target = $region25
  $region24: #{cre_forward.1} parent=0 // pred_region
    _
  $region25: #{cre_forward.1} parent=0 // pred_fallthru
    _
  // Predicated region
  $region26: #{cre_forward.1} parent=0 // pred_check
    _
  $region27: #{cre_forward.1} parent=0 // pred_check_branch
    %26 = sbr.rel (0) target = $region29
  $region28: #{cre_forward.1} parent=0 // pred_region
    _
  $region29: #{cre_forward.1} parent=0 // pred_fallthru
    _
  // Predicated region
  $region30: #{cre_forward.1} parent=0 // pred_check
    _
  $region31: #{cre_forward.1} parent=0 // pred_check_branch
    %28 = sbr.rel (0) target = $region33
  $region32: #{cre_forward.1} parent=0 // pred_region
    _
  $region33: #{cre_forward.1} parent=0 // pred_fallthru
    _
  %v30 = vld [vmem:[%s2] sm:$0x3f]
  %v31 = vld [vmem:[%s0] sm:$0xff]
  %v32 = vld [vmem:[%s0 + $0x8] sm:$0xff]
  %vm33 = vcmask 261120
  %v34 = vsel %vm33, %v31, 0.0
  %35 = vadd.xlane.f32.xlu0 %v34
  %v36 = vpop.xlane.xlu0 %35
  %v37 = vsel %vm33, %v32, 0.0
  %38 = vadd.xlane.f32.xlu0 %v37
  %v39 = vpop.xlane.xlu0 %38
  %v40 = vrcp.pop 32.0
  %v41 = vmul.f32 %v36, %v40
  %v42 = vmul.f32 %v39, %v40
  %v43 = vsub.f32 %v31, %v41
  %v44 = vsub.f32 %v32, %v42
  %v45 = vmul.f32 %v43, %v43
  %v46 = vmul.f32 %v44, %v44
  %v47 = vsel %vm33, %v45, 0.0
  %48 = vadd.xlane.f32.xlu0 %v47
  %v49 = vpop.xlane.xlu0 %48
  %v50 = vsel %vm33, %v46, 0.0
  %51 = vadd.xlane.f32.xlu0 %v50
  %v52 = vpop.xlane.xlu0 %51
  %v53 = vmul.f32 %v49, %v40
  %v54 = vmul.f32 %v52, %v40
  %v55 = vadd.f32 %v53, 1e-12
  %v56 = vadd.f32 %v54, 1e-12
  %v57 = vrsqrt.pop %v55
  %v58 = vrsqrt.pop %v56
  %v59 = vmul.f32 %v43, %v57
  %v60 = vmul.f32 %v44, %v58
  %v61 = vlaneseq
  %v62 = vshrl.u32 %v61, 7
  %v63 = vsub.s32 0, %v62
  %v64 = vrot.slane %v30, %v63
  %v65 = vmul.f32 %v59, %v64
  %v66 = vmul.f32 %v60, %v64
  %v67 = vlaneseq
  %v68 = vshrl.u32 %v67, 7
  %v69 = vsub.s32 1, %v68
  %v70 = vrot.slane %v30, %v69
  %v71 = vadd.f32 %v65, %v70
  %v72 = vadd.f32 %v66, %v70
  %v73 = vld [vmem:[%s1] sm:$0xff]
  %v74 = vld [vmem:[%s1 + $0x8] sm:$0xff]
  %v75 = vld [vmem:[%s3] sm:$0xff]
  %v76 = vld [vmem:[%s4] sm:$0xf]
  %v77 = vld [vmem:[%s4 + $0x4] sm:$0xf]
  %v78 = vld [vmem:[%s4 + $0x8] sm:$0xf]
  %v79 = vld [vmem:[%s4 + $0xc] sm:$0xf]
  %v80 = vpack.c.bf16 %v72, %v71
  %v81 = vlaneseq
  %v82 = vshrl.u32 %v81, 7
  %v83 = vsub.s32 0, %v82
  %v84 = vrot.slane %v75, %v83
  %v89 = vunpack.c.l.b16 %v76
  %v90 = vunpack.c.l.b16 %v77
  %v91 = vunpack.c.l.b16 %v78
  %v92 = vunpack.c.l.b16 %v79
  %v93 = vpack.c.b16 %v90, %v89
  %v94 = vpack.c.b16 %v92, %v91
  %v98 = vsel %vm33, %v80, 0
  %100 = vmatprep.subr.bf16.mxu0 0
  %101 = vmatpush1.bf16.msra.mxu0 0
  %102 = vmatprep.subr.bf16.mxu0 0
  %103 = vmatpush1.bf16.msra.mxu0 0
  %104 = vmatprep.subr.bf16.mxu0 0
  %105 = vmatpush1.bf16.msra.mxu0 0
  %106 = vmatprep.subr.bf16.mxu0 0
  %107 = vmatpush1.bf16.msra.mxu0 0
  %108 = vmatprep.subr.bf16.mxu0 0
  %109 = vmatpush1.bf16.msra.mxu0 0
  %110 = vmatprep.subr.bf16.mxu0 0
  %111 = vmatpush1.bf16.msra.mxu0 0
  %112 = vmatprep.subr.bf16.mxu0 0
  %113 = vmatpush1.bf16.msra.mxu0 %v94
  %114 = vmatprep.subr.bf16.mxu0 0
  %115 = vmatpush1.bf16.msra.mxu0 %v93
  %116 = vmatprep.subr.bf16.mxu0 0
  %117 = vmatpush2.bf16.msra.mxu0 0
  %118 = vmatprep.subr.bf16.mxu0 0
  %119 = vmatpush2.bf16.msra.mxu0 0
  %120 = vmatprep.subr.bf16.mxu0 0
  %121 = vmatpush2.bf16.msra.mxu0 0
  %122 = vmatprep.subr.bf16.mxu0 0
  %123 = vmatpush2.bf16.msra.mxu0 0
  %124 = vmatprep.subr.bf16.mxu0 0
  %125 = vmatpush2.bf16.msra.mxu0 0
  %126 = vmatprep.subr.bf16.mxu0 0
  %127 = vmatpush2.bf16.msra.mxu0 0
  %128 = vmatprep.subr.bf16.mxu0 0
  %129 = vmatpush2.bf16.msra.mxu0 0
  %130 = vmatprep.subr.bf16.mxu0 0
  %131 = vmatpush2.bf16.msra.mxu0 0
  %132 = vmatprep.mubr.bf16.mxu0 0
  %133 = vmatmul.mubr.bf16.gmra.mxu0 %v98
  %v134 = vpop.f32.mrf.mxu0
  %v135 = vadd.f32 %v84, %v134
  %v136 = vpop.f32.mrf.mxu0
  %v137 = vpop.f32.mrf.mxu0
  %v138 = vadd.f32 %v84, %v137
  %v139 = vpop.f32.mrf.mxu0
  %140 = vdwg.mxu0
  %143 = vrot.lane.b32.xlu0 %v135, 120
  %v144 = vpop.permute.xlu0 %143
  %145 = vrot.lane.b32.xlu0 %v138, 120
  %v146 = vpop.permute.xlu0 %145
  %149 = vrot.lane.b32.xlu0 %v135, 112
  %v150 = vpop.permute.xlu0 %149
  %151 = vrot.lane.b32.xlu0 %v138, 112
  %v152 = vpop.permute.xlu0 %151
  %155 = vrot.lane.b32.xlu0 %v135, 104
  %v156 = vpop.permute.xlu0 %155
  %157 = vrot.lane.b32.xlu0 %v138, 104
  %v158 = vpop.permute.xlu0 %157
  %v161 = vpack.c.bf16 %v138, %v135
  %v162 = vpack.c.bf16 %v146, %v144
  %v163 = vpack.c.bf16 %v152, %v150
  %v164 = vpack.c.bf16 %v158, %v156
  %166 = vrot.lane.b32.xlu0 %v161, 96
  %v167 = vpop.permute.xlu0 %166
  %vm168 = vcmask 64512
  %v170 = vsel %vm168, %v161, 0
  %v173 = vsel %vm168, %v167, 0
  %175 = vmatprep.subr.bf16.mxu0 0
  %176 = vmatpush1.bf16.xpose.msra.mxu0 0
  %177 = vmatprep.subr.bf16.mxu0 0
  %178 = vmatpush1.bf16.xpose.msra.mxu0 0
  %179 = vmatprep.subr.bf16.mxu0 0
  %180 = vmatpush1.bf16.xpose.msra.mxu0 0
  %181 = vmatprep.subr.bf16.mxu0 0
  %182 = vmatpush1.bf16.xpose.msra.mxu0 0
  %183 = vmatprep.subr.bf16.mxu0 0
  %184 = vmatpush1.bf16.xpose.msra.mxu0 0
  %185 = vmatprep.subr.bf16.mxu0 0
  %186 = vmatpush1.bf16.xpose.msra.mxu0 0
  %187 = vmatprep.subr.bf16.mxu0 0
  %188 = vmatpush1.bf16.xpose.msra.mxu0 0
  %189 = vmatprep.subr.bf16.mxu0 0
  %190 = vmatpush1.bf16.xpose.msra.mxu0 %v173
  %191 = vmatprep.subr.bf16.mxu0 0
  %192 = vmatpush2.bf16.xpose.msra.mxu0 0
  %193 = vmatprep.subr.bf16.mxu0 0
  %194 = vmatpush2.bf16.xpose.msra.mxu0 0
  %195 = vmatprep.subr.bf16.mxu0 0
  %196 = vmatpush2.bf16.xpose.msra.mxu0 0
  %197 = vmatprep.subr.bf16.mxu0 0
  %198 = vmatpush2.bf16.xpose.msra.mxu0 0
  %199 = vmatprep.subr.bf16.mxu0 0
  %200 = vmatpush2.bf16.xpose.msra.mxu0 0
  %201 = vmatprep.subr.bf16.mxu0 0
  %202 = vmatpush2.bf16.xpose.msra.mxu0 0
  %203 = vmatprep.subr.bf16.mxu0 0
  %204 = vmatpush2.bf16.xpose.msra.mxu0 0
  %205 = vmatprep.subr.bf16.mxu0 0
  %206 = vmatpush2.bf16.xpose.msra.mxu0 0
  %207 = vmatprep.mubr.bf16.mxu0 0
  %208 = vmatmul.mubr.bf16.gmra.mxu0 %v170
  %v209 = vpop.f32.mrf.mxu0
  %v210 = vadd.f32 %v73, %v209
  %v211 = vpop.f32.mrf.mxu0
  %v212 = vpop.f32.mrf.mxu0
  %v213 = vadd.f32 %v74, %v212
  %v214 = vpop.f32.mrf.mxu0
  %215 = vdwg.mxu0
  %217 = vrot.lane.b32.xlu0 %v162, 96
  %v218 = vpop.permute.xlu0 %217
  %v220 = vsel %vm168, %v162, 0
  %v223 = vsel %vm168, %v218, 0
  %225 = vmatprep.subr.bf16.mxu0 0
  %226 = vmatpush1.bf16.xpose.msra.mxu0 0
  %227 = vmatprep.subr.bf16.mxu0 0
  %228 = vmatpush1.bf16.xpose.msra.mxu0 0
  %229 = vmatprep.subr.bf16.mxu0 0
  %230 = vmatpush1.bf16.xpose.msra.mxu0 0
  %231 = vmatprep.subr.bf16.mxu0 0
  %232 = vmatpush1.bf16.xpose.msra.mxu0 0
  %233 = vmatprep.subr.bf16.mxu0 0
  %234 = vmatpush1.bf16.xpose.msra.mxu0 0
  %235 = vmatprep.subr.bf16.mxu0 0
  %236 = vmatpush1.bf16.xpose.msra.mxu0 0
  %237 = vmatprep.subr.bf16.mxu0 0
  %238 = vmatpush1.bf16.xpose.msra.mxu0 0
  %239 = vmatprep.subr.bf16.mxu0 0
  %240 = vmatpush1.bf16.xpose.msra.mxu0 %v223
  %241 = vmatprep.subr.bf16.mxu0 0
  %242 = vmatpush2.bf16.xpose.msra.mxu0 0
  %243 = vmatprep.subr.bf16.mxu0 0
  %244 = vmatpush2.bf16.xpose.msra.mxu0 0
  %245 = vmatprep.subr.bf16.mxu0 0
  %246 = vmatpush2.bf16.xpose.msra.mxu0 0
  %247 = vmatprep.subr.bf16.mxu0 0
  %248 = vmatpush2.bf16.xpose.msra.mxu0 0
  %249 = vmatprep.subr.bf16.mxu0 0
  %250 = vmatpush2.bf16.xpose.msra.mxu0 0
  %251 = vmatprep.subr.bf16.mxu0 0
  %252 = vmatpush2.bf16.xpose.msra.mxu0 0
  %253 = vmatprep.subr.bf16.mxu0 0
  %254 = vmatpush2.bf16.xpose.msra.mxu0 0
  %255 = vmatprep.subr.bf16.mxu0 0
  %256 = vmatpush2.bf16.xpose.msra.mxu0 0
  %257 = vmatprep.mubr.bf16.mxu0 0
  %258 = vmatmul.mubr.bf16.gmra.mxu0 %v220
  %v259 = vpop.f32.mrf.mxu0
  %v260 = vadd.f32 %v73, %v259
  %v261 = vpop.f32.mrf.mxu0
  %v262 = vpop.f32.mrf.mxu0
  %v263 = vadd.f32 %v74, %v262
  %v264 = vpop.f32.mrf.mxu0
  %265 = vdwg.mxu0
  %267 = vrot.lane.b32.xlu0 %v163, 96
  %v268 = vpop.permute.xlu0 %267
  %v270 = vsel %vm168, %v163, 0
  %v273 = vsel %vm168, %v268, 0
  %275 = vmatprep.subr.bf16.mxu0 0
  %276 = vmatpush1.bf16.xpose.msra.mxu0 0
  %277 = vmatprep.subr.bf16.mxu0 0
  %278 = vmatpush1.bf16.xpose.msra.mxu0 0
  %279 = vmatprep.subr.bf16.mxu0 0
  %280 = vmatpush1.bf16.xpose.msra.mxu0 0
  %281 = vmatprep.subr.bf16.mxu0 0
  %282 = vmatpush1.bf16.xpose.msra.mxu0 0
  %283 = vmatprep.subr.bf16.mxu0 0
  %284 = vmatpush1.bf16.xpose.msra.mxu0 0
  %285 = vmatprep.subr.bf16.mxu0 0
  %286 = vmatpush1.bf16.xpose.msra.mxu0 0
  %287 = vmatprep.subr.bf16.mxu0 0
  %288 = vmatpush1.bf16.xpose.msra.mxu0 0
  %289 = vmatprep.subr.bf16.mxu0 0
  %290 = vmatpush1.bf16.xpose.msra.mxu0 %v273
  %291 = vmatprep.subr.bf16.mxu0 0
  %292 = vmatpush2.bf16.xpose.msra.mxu0 0
  %293 = vmatprep.subr.bf16.mxu0 0
  %294 = vmatpush2.bf16.xpose.msra.mxu0 0
  %295 = vmatprep.subr.bf16.mxu0 0
  %296 = vmatpush2.bf16.xpose.msra.mxu0 0
  %297 = vmatprep.subr.bf16.mxu0 0
  %298 = vmatpush2.bf16.xpose.msra.mxu0 0
  %299 = vmatprep.subr.bf16.mxu0 0
  %300 = vmatpush2.bf16.xpose.msra.mxu0 0
  %301 = vmatprep.subr.bf16.mxu0 0
  %302 = vmatpush2.bf16.xpose.msra.mxu0 0
  %303 = vmatprep.subr.bf16.mxu0 0
  %304 = vmatpush2.bf16.xpose.msra.mxu0 0
  %305 = vmatprep.subr.bf16.mxu0 0
  %306 = vmatpush2.bf16.xpose.msra.mxu0 0
  %307 = vmatprep.mubr.bf16.mxu0 0
  %308 = vmatmul.mubr.bf16.gmra.mxu0 %v270
  %v309 = vpop.f32.mrf.mxu0
  %v310 = vadd.f32 %v73, %v309
  %v311 = vpop.f32.mrf.mxu0
  %v312 = vpop.f32.mrf.mxu0
  %v313 = vadd.f32 %v74, %v312
  %v314 = vpop.f32.mrf.mxu0
  %315 = vdwg.mxu0
  %317 = vrot.lane.b32.xlu0 %v164, 96
  %v318 = vpop.permute.xlu0 %317
  %v320 = vsel %vm168, %v164, 0
  %v323 = vsel %vm168, %v318, 0
  %325 = vmatprep.subr.bf16.mxu0 0
  %326 = vmatpush1.bf16.xpose.msra.mxu0 0
  %327 = vmatprep.subr.bf16.mxu0 0
  %328 = vmatpush1.bf16.xpose.msra.mxu0 0
  %329 = vmatprep.subr.bf16.mxu0 0
  %330 = vmatpush1.bf16.xpose.msra.mxu0 0
  %331 = vmatprep.subr.bf16.mxu0 0
  %332 = vmatpush1.bf16.xpose.msra.mxu0 0
  %333 = vmatprep.subr.bf16.mxu0 0
  %334 = vmatpush1.bf16.xpose.msra.mxu0 0
  %335 = vmatprep.subr.bf16.mxu0 0
  %336 = vmatpush1.bf16.xpose.msra.mxu0 0
  %337 = vmatprep.subr.bf16.mxu0 0
  %338 = vmatpush1.bf16.xpose.msra.mxu0 0
  %339 = vmatprep.subr.bf16.mxu0 0
  %340 = vmatpush1.bf16.xpose.msra.mxu0 %v323
  %341 = vmatprep.subr.bf16.mxu0 0
  %342 = vmatpush2.bf16.xpose.msra.mxu0 0
  %343 = vmatprep.subr.bf16.mxu0 0
  %344 = vmatpush2.bf16.xpose.msra.mxu0 0
  %345 = vmatprep.subr.bf16.mxu0 0
  %346 = vmatpush2.bf16.xpose.msra.mxu0 0
  %347 = vmatprep.subr.bf16.mxu0 0
  %348 = vmatpush2.bf16.xpose.msra.mxu0 0
  %349 = vmatprep.subr.bf16.mxu0 0
  %350 = vmatpush2.bf16.xpose.msra.mxu0 0
  %351 = vmatprep.subr.bf16.mxu0 0
  %352 = vmatpush2.bf16.xpose.msra.mxu0 0
  %353 = vmatprep.subr.bf16.mxu0 0
  %354 = vmatpush2.bf16.xpose.msra.mxu0 0
  %355 = vmatprep.subr.bf16.mxu0 0
  %356 = vmatpush2.bf16.xpose.msra.mxu0 0
  %357 = vmatprep.mubr.bf16.mxu0 0
  %358 = vmatmul.mubr.bf16.gmra.mxu0 %v320
  %v359 = vpop.f32.mrf.mxu0
  %v360 = vadd.f32 %v73, %v359
  %v361 = vpop.f32.mrf.mxu0
  %v362 = vpop.f32.mrf.mxu0
  %v363 = vadd.f32 %v74, %v362
  %v364 = vpop.f32.mrf.mxu0
  %365 = vdwg.mxu0
  %vm366 = vcmask 130048
  %v367 = vsel %vm366, %v210, -inf
  %368 = vmax.xlane.f32.xlu0 %v367
  %v369 = vpop.xlane.xlu0 %368
  %v370 = vsel %vm366, %v213, -inf
  %371 = vmax.xlane.f32.xlu0 %v370
  %v372 = vpop.xlane.xlu0 %371
  %v373 = vsel %vm366, %v260, -inf
  %374 = vmax.xlane.f32.xlu0 %v373
  %v375 = vpop.xlane.xlu0 %374
  %v376 = vsel %vm366, %v263, -inf
  %377 = vmax.xlane.f32.xlu0 %v376
  %v378 = vpop.xlane.xlu0 %377
  %v379 = vsel %vm366, %v310, -inf
  %380 = vmax.xlane.f32.xlu0 %v379
  %v381 = vpop.xlane.xlu0 %380
  %v382 = vsel %vm366, %v313, -inf
  %383 = vmax.xlane.f32.xlu0 %v382
  %v384 = vpop.xlane.xlu0 %383
  %v385 = vsel %vm366, %v360, -inf
  %386 = vmax.xlane.f32.xlu0 %v385
  %v387 = vpop.xlane.xlu0 %386
  %v388 = vsel %vm366, %v363, -inf
  %389 = vmax.xlane.f32.xlu0 %v388
  %v390 = vpop.xlane.xlu0 %389
  %v391 = vsub.f32 %v210, %v369
  %v392 = vsub.f32 %v213, %v372
  %v393 = vsub.f32 %v260, %v375
  %v394 = vsub.f32 %v263, %v378
  %v395 = vsub.f32 %v310, %v381
  %v396 = vsub.f32 %v313, %v384
  %v397 = vsub.f32 %v360, %v387
  %v398 = vsub.f32 %v363, %v390
  %v399 = vmul.f32 %v391, 1.442695
  %v400 = vpow.pop %v399
  %v401 = vmul.f32 %v392, 1.442695
  %v402 = vpow.pop %v401
  %v403 = vmul.f32 %v393, 1.442695
  %v404 = vpow.pop %v403
  %v405 = vmul.f32 %v394, 1.442695
  %v406 = vpow.pop %v405
  %v407 = vmul.f32 %v395, 1.442695
  %v408 = vpow.pop %v407
  %v409 = vmul.f32 %v396, 1.442695
  %v410 = vpow.pop %v409
  %v411 = vmul.f32 %v397, 1.442695
  %v412 = vpow.pop %v411
  %v413 = vmul.f32 %v398, 1.442695
  %v414 = vpow.pop %v413
  %v415 = vsel %vm366, %v400, 0.0
  %416 = vadd.xlane.f32.xlu0 %v415
  %v417 = vpop.xlane.xlu0 %416
  %v418 = vsel %vm366, %v402, 0.0
  %419 = vadd.xlane.f32.xlu0 %v418
  %v420 = vpop.xlane.xlu0 %419
  %v421 = vsel %vm366, %v404, 0.0
  %422 = vadd.xlane.f32.xlu0 %v421
  %v423 = vpop.xlane.xlu0 %422
  %v424 = vsel %vm366, %v406, 0.0
  %425 = vadd.xlane.f32.xlu0 %v424
  %v426 = vpop.xlane.xlu0 %425
  %v427 = vsel %vm366, %v408, 0.0
  %428 = vadd.xlane.f32.xlu0 %v427
  %v429 = vpop.xlane.xlu0 %428
  %v430 = vsel %vm366, %v410, 0.0
  %431 = vadd.xlane.f32.xlu0 %v430
  %v432 = vpop.xlane.xlu0 %431
  %v433 = vsel %vm366, %v412, 0.0
  %434 = vadd.xlane.f32.xlu0 %v433
  %v435 = vpop.xlane.xlu0 %434
  %v436 = vsel %vm366, %v414, 0.0
  %437 = vadd.xlane.f32.xlu0 %v436
  %v438 = vpop.xlane.xlu0 %437
  %v439 = vrcp.pop %v417
  %v440 = vrcp.pop %v420
  %v441 = vrcp.pop %v423
  %v442 = vrcp.pop %v426
  %v443 = vrcp.pop %v429
  %v444 = vrcp.pop %v432
  %v445 = vrcp.pop %v435
  %v446 = vrcp.pop %v438
  %v447 = vpack.c.bf16 %v402, %v400
  %v448 = vpack.c.bf16 %v406, %v404
  %v449 = vpack.c.bf16 %v410, %v408
  %v450 = vpack.c.bf16 %v414, %v412
  %451 = vrot.lane.b32.xlu0 %v161, 64
  %v452 = vpop.permute.xlu0 %451
  %v455 = vsel %vm366, %v447, 0
  %457 = vmatprep.subr.bf16.mxu0 0
  %458 = vmatpush1.bf16.msra.mxu0 0
  %459 = vmatprep.subr.bf16.mxu0 0
  %460 = vmatpush1.bf16.msra.mxu0 0
  %461 = vmatprep.subr.bf16.mxu0 0
  %462 = vmatpush1.bf16.msra.mxu0 0
  %463 = vmatprep.subr.bf16.mxu0 0
  %464 = vmatpush1.bf16.msra.mxu0 0
  %465 = vmatprep.subr.bf16.mxu0 0
  %466 = vmatpush1.bf16.msra.mxu0 0
  %467 = vmatprep.subr.bf16.mxu0 0
  %468 = vmatpush1.bf16.msra.mxu0 0
  %469 = vmatprep.subr.bf16.mxu0 0
  %470 = vmatpush1.bf16.msra.mxu0 0
  %471 = vmatprep.subr.bf16.mxu0 0
  %472 = vmatpush1.bf16.msra.mxu0 %v452
  %473 = vmatprep.subr.bf16.mxu0 0
  %474 = vmatpush2.bf16.msra.mxu0 0
  %475 = vmatprep.subr.bf16.mxu0 0
  %476 = vmatpush2.bf16.msra.mxu0 0
  %477 = vmatprep.subr.bf16.mxu0 0
  %478 = vmatpush2.bf16.msra.mxu0 0
  %479 = vmatprep.subr.bf16.mxu0 0
  %480 = vmatpush2.bf16.msra.mxu0 0
  %481 = vmatprep.subr.bf16.mxu0 0
  %482 = vmatpush2.bf16.msra.mxu0 0
  %483 = vmatprep.subr.bf16.mxu0 0
  %484 = vmatpush2.bf16.msra.mxu0 0
  %485 = vmatprep.subr.bf16.mxu0 0
  %486 = vmatpush2.bf16.msra.mxu0 0
  %487 = vmatprep.subr.bf16.mxu0 0
  %488 = vmatpush2.bf16.msra.mxu0 0
  %489 = vmatprep.mubr.bf16.mxu0 0
  %490 = vmatmul.mubr.bf16.gmra.mxu0 %v455
  %v491 = vpop.f32.mrf.mxu0
  %v492 = vadd.f32 0.0, %v491
  %v493 = vpop.f32.mrf.mxu0
  %v494 = vpop.f32.mrf.mxu0
  %v495 = vadd.f32 0.0, %v494
  %v496 = vpop.f32.mrf.mxu0
  %497 = vdwg.mxu0
  %498 = vrot.lane.b32.xlu0 %v162, 64
  %v499 = vpop.permute.xlu0 %498
  %v502 = vsel %vm366, %v448, 0
  %504 = vmatprep.subr.bf16.mxu0 0
  %505 = vmatpush1.bf16.msra.mxu0 0
  %506 = vmatprep.subr.bf16.mxu0 0
  %507 = vmatpush1.bf16.msra.mxu0 0
  %508 = vmatprep.subr.bf16.mxu0 0
  %509 = vmatpush1.bf16.msra.mxu0 0
  %510 = vmatprep.subr.bf16.mxu0 0
  %511 = vmatpush1.bf16.msra.mxu0 0
  %512 = vmatprep.subr.bf16.mxu0 0
  %513 = vmatpush1.bf16.msra.mxu0 0
  %514 = vmatprep.subr.bf16.mxu0 0
  %515 = vmatpush1.bf16.msra.mxu0 0
  %516 = vmatprep.subr.bf16.mxu0 0
  %517 = vmatpush1.bf16.msra.mxu0 0
  %518 = vmatprep.subr.bf16.mxu0 0
  %519 = vmatpush1.bf16.msra.mxu0 %v499
  %520 = vmatprep.subr.bf16.mxu0 0
  %521 = vmatpush2.bf16.msra.mxu0 0
  %522 = vmatprep.subr.bf16.mxu0 0
  %523 = vmatpush2.bf16.msra.mxu0 0
  %524 = vmatprep.subr.bf16.mxu0 0
  %525 = vmatpush2.bf16.msra.mxu0 0
  %526 = vmatprep.subr.bf16.mxu0 0
  %527 = vmatpush2.bf16.msra.mxu0 0
  %528 = vmatprep.subr.bf16.mxu0 0
  %529 = vmatpush2.bf16.msra.mxu0 0
  %530 = vmatprep.subr.bf16.mxu0 0
  %531 = vmatpush2.bf16.msra.mxu0 0
  %532 = vmatprep.subr.bf16.mxu0 0
  %533 = vmatpush2.bf16.msra.mxu0 0
  %534 = vmatprep.subr.bf16.mxu0 0
  %535 = vmatpush2.bf16.msra.mxu0 0
  %536 = vmatprep.mubr.bf16.mxu0 0
  %537 = vmatmul.mubr.bf16.gmra.mxu0 %v502
  %v538 = vpop.f32.mrf.mxu0
  %v539 = vadd.f32 0.0, %v538
  %v540 = vpop.f32.mrf.mxu0
  %v541 = vpop.f32.mrf.mxu0
  %v542 = vadd.f32 0.0, %v541
  %v543 = vpop.f32.mrf.mxu0
  %544 = vdwg.mxu0
  %545 = vrot.lane.b32.xlu0 %v163, 64
  %v546 = vpop.permute.xlu0 %545
  %v549 = vsel %vm366, %v449, 0
  %551 = vmatprep.subr.bf16.mxu0 0
  %552 = vmatpush1.bf16.msra.mxu0 0
  %553 = vmatprep.subr.bf16.mxu0 0
  %554 = vmatpush1.bf16.msra.mxu0 0
  %555 = vmatprep.subr.bf16.mxu0 0
  %556 = vmatpush1.bf16.msra.mxu0 0
  %557 = vmatprep.subr.bf16.mxu0 0
  %558 = vmatpush1.bf16.msra.mxu0 0
  %559 = vmatprep.subr.bf16.mxu0 0
  %560 = vmatpush1.bf16.msra.mxu0 0
  %561 = vmatprep.subr.bf16.mxu0 0
  %562 = vmatpush1.bf16.msra.mxu0 0
  %563 = vmatprep.subr.bf16.mxu0 0
  %564 = vmatpush1.bf16.msra.mxu0 0
  %565 = vmatprep.subr.bf16.mxu0 0
  %566 = vmatpush1.bf16.msra.mxu0 %v546
  %567 = vmatprep.subr.bf16.mxu0 0
  %568 = vmatpush2.bf16.msra.mxu0 0
  %569 = vmatprep.subr.bf16.mxu0 0
  %570 = vmatpush2.bf16.msra.mxu0 0
  %571 = vmatprep.subr.bf16.mxu0 0
  %572 = vmatpush2.bf16.msra.mxu0 0
  %573 = vmatprep.subr.bf16.mxu0 0
  %574 = vmatpush2.bf16.msra.mxu0 0
  %575 = vmatprep.subr.bf16.mxu0 0
  %576 = vmatpush2.bf16.msra.mxu0 0
  %577 = vmatprep.subr.bf16.mxu0 0
  %578 = vmatpush2.bf16.msra.mxu0 0
  %579 = vmatprep.subr.bf16.mxu0 0
  %580 = vmatpush2.bf16.msra.mxu0 0
  %581 = vmatprep.subr.bf16.mxu0 0
  %582 = vmatpush2.bf16.msra.mxu0 0
  %583 = vmatprep.mubr.bf16.mxu0 0
  %584 = vmatmul.mubr.bf16.gmra.mxu0 %v549
  %v585 = vpop.f32.mrf.mxu0
  %v586 = vadd.f32 0.0, %v585
  %v587 = vpop.f32.mrf.mxu0
  %v588 = vpop.f32.mrf.mxu0
  %v589 = vadd.f32 0.0, %v588
  %v590 = vpop.f32.mrf.mxu0
  %591 = vdwg.mxu0
  %592 = vrot.lane.b32.xlu0 %v164, 64
  %v593 = vpop.permute.xlu0 %592
  %v596 = vsel %vm366, %v450, 0
  %598 = vmatprep.subr.bf16.mxu0 0
  %599 = vmatpush1.bf16.msra.mxu0 0
  %600 = vmatprep.subr.bf16.mxu0 0
  %601 = vmatpush1.bf16.msra.mxu0 0
  %602 = vmatprep.subr.bf16.mxu0 0
  %603 = vmatpush1.bf16.msra.mxu0 0
  %604 = vmatprep.subr.bf16.mxu0 0
  %605 = vmatpush1.bf16.msra.mxu0 0
  %606 = vmatprep.subr.bf16.mxu0 0
  %607 = vmatpush1.bf16.msra.mxu0 0
  %608 = vmatprep.subr.bf16.mxu0 0
  %609 = vmatpush1.bf16.msra.mxu0 0
  %610 = vmatprep.subr.bf16.mxu0 0
  %611 = vmatpush1.bf16.msra.mxu0 0
  %612 = vmatprep.subr.bf16.mxu0 0
  %613 = vmatpush1.bf16.msra.mxu0 %v593
  %614 = vmatprep.subr.bf16.mxu0 0
  %615 = vmatpush2.bf16.msra.mxu0 0
  %616 = vmatprep.subr.bf16.mxu0 0
  %617 = vmatpush2.bf16.msra.mxu0 0
  %618 = vmatprep.subr.bf16.mxu0 0
  %619 = vmatpush2.bf16.msra.mxu0 0
  %620 = vmatprep.subr.bf16.mxu0 0
  %621 = vmatpush2.bf16.msra.mxu0 0
  %622 = vmatprep.subr.bf16.mxu0 0
  %623 = vmatpush2.bf16.msra.mxu0 0
  %624 = vmatprep.subr.bf16.mxu0 0
  %625 = vmatpush2.bf16.msra.mxu0 0
  %626 = vmatprep.subr.bf16.mxu0 0
  %627 = vmatpush2.bf16.msra.mxu0 0
  %628 = vmatprep.subr.bf16.mxu0 0
  %629 = vmatpush2.bf16.msra.mxu0 0
  %630 = vmatprep.mubr.bf16.mxu0 0
  %631 = vmatmul.mubr.bf16.gmra.mxu0 %v596
  %v632 = vpop.f32.mrf.mxu0
  %v633 = vadd.f32 0.0, %v632
  %v634 = vpop.f32.mrf.mxu0
  %v635 = vpop.f32.mrf.mxu0
  %v636 = vadd.f32 0.0, %v635
  %v637 = vpop.f32.mrf.mxu0
  %638 = vdwg.mxu0
  %v639 = vmul.f32 %v492, %v439
  %v640 = vmul.f32 %v495, %v440
  %v641 = vmul.f32 %v539, %v441
  %v642 = vmul.f32 %v542, %v442
  %v643 = vmul.f32 %v586, %v443
  %v644 = vmul.f32 %v589, %v444
  %v645 = vmul.f32 %v633, %v445
  %v646 = vmul.f32 %v636, %v446
  %647 = vst.msk [vmem:[#allocation2] sm:$0xff] %vm168, %v639
  %648 = vst.msk [vmem:[#allocation2 + $0x8] sm:$0xff] %vm168, %v640
  %651 = vrot.lane.b32.xlu0 %v641, 8
  %v652 = vpop.permute.xlu0 %651
  %653 = vrot.lane.b32.xlu0 %v642, 8
  %v654 = vpop.permute.xlu0 %653
  %vm657 = vcmask 130112
  %658 = vst.msk [vmem:[#allocation2] sm:$0xff] %vm657, %v652
  %659 = vst.msk [vmem:[#allocation2 + $0x8] sm:$0xff] %vm657, %v654
  %662 = vrot.lane.b32.xlu0 %v643, 16
  %v663 = vpop.permute.xlu0 %662
  %664 = vrot.lane.b32.xlu0 %v644, 16
  %v665 = vpop.permute.xlu0 %664
  %vm668 = vcmask 195712
  %669 = vst.msk [vmem:[#allocation2] sm:$0xff] %vm668, %v663
  %670 = vst.msk [vmem:[#allocation2 + $0x8] sm:$0xff] %vm668, %v665
  %673 = vrot.lane.b32.xlu0 %v645, 24
  %v674 = vpop.permute.xlu0 %673
  %675 = vrot.lane.b32.xlu0 %v646, 24
  %v676 = vpop.permute.xlu0 %675
  %vm679 = vcmask 261312
  %680 = vst.msk [vmem:[#allocation2] sm:$0xff] %vm679, %v674
  %681 = vst.msk [vmem:[#allocation2 + $0x8] sm:$0xff] %vm679, %v676
  %v682 = vld [vmem:[#allocation2] sm:$0xff]
  %v683 = vld [vmem:[#allocation2 + $0x8] sm:$0xff]
  %v684 = vld [vmem:[%s5] sm:$0xf]
  %v685 = vld [vmem:[%s5 + $0x4] sm:$0xf]
  %v686 = vld [vmem:[%s5 + $0x8] sm:$0xf]
  %v687 = vld [vmem:[%s5 + $0xc] sm:$0xf]
  %v688 = vpack.c.bf16 %v683, %v682
  %v689 = vlaneseq
  %v690 = vshrl.u32 %v689, 7
  %v691 = vsub.s32 1, %v690
  %v692 = vrot.slane %v75, %v691
  %v697 = vunpack.c.l.b16 %v684
  %v698 = vunpack.c.l.b16 %v685
  %v699 = vunpack.c.l.b16 %v686
  %v700 = vunpack.c.l.b16 %v687
  %v701 = vpack.c.b16 %v698, %v697
  %v702 = vpack.c.b16 %v700, %v699
  %v706 = vsel %vm33, %v688, 0
  %708 = vmatprep.subr.bf16.mxu0 0
  %709 = vmatpush1.bf16.msra.mxu0 0
  %710 = vmatprep.subr.bf16.mxu0 0
  %711 = vmatpush1.bf16.msra.mxu0 0
  %712 = vmatprep.subr.bf16.mxu0 0
  %713 = vmatpush1.bf16.msra.mxu0 0
  %714 = vmatprep.subr.bf16.mxu0 0
  %715 = vmatpush1.bf16.msra.mxu0 0
  %716 = vmatprep.subr.bf16.mxu0 0
  %717 = vmatpush1.bf16.msra.mxu0 0
  %718 = vmatprep.subr.bf16.mxu0 0
  %719 = vmatpush1.bf16.msra.mxu0 0
  %720 = vmatprep.subr.bf16.mxu0 0
  %721 = vmatpush1.bf16.msra.mxu0 %v702
  %722 = vmatprep.subr.bf16.mxu0 0
  %723 = vmatpush1.bf16.msra.mxu0 %v701
  %724 = vmatprep.subr.bf16.mxu0 0
  %725 = vmatpush2.bf16.msra.mxu0 0
  %726 = vmatprep.subr.bf16.mxu0 0
  %727 = vmatpush2.bf16.msra.mxu0 0
  %728 = vmatprep.subr.bf16.mxu0 0
  %729 = vmatpush2.bf16.msra.mxu0 0
  %730 = vmatprep.subr.bf16.mxu0 0
  %731 = vmatpush2.bf16.msra.mxu0 0
  %732 = vmatprep.subr.bf16.mxu0 0
  %733 = vmatpush2.bf16.msra.mxu0 0
  %734 = vmatprep.subr.bf16.mxu0 0
  %735 = vmatpush2.bf16.msra.mxu0 0
  %736 = vmatprep.subr.bf16.mxu0 0
  %737 = vmatpush2.bf16.msra.mxu0 0
  %738 = vmatprep.subr.bf16.mxu0 0
  %739 = vmatpush2.bf16.msra.mxu0 0
  %740 = vmatprep.mubr.bf16.mxu0 0
  %741 = vmatmul.mubr.bf16.gmra.mxu0 %v706
  %v742 = vpop.f32.mrf.mxu0
  %v743 = vadd.f32 %v692, %v742
  %v744 = vpop.f32.mrf.mxu0
  %v745 = vpop.f32.mrf.mxu0
  %v746 = vadd.f32 %v692, %v745
  %v747 = vpop.f32.mrf.mxu0
  %748 = vdwg.mxu0
  %v749 = vadd.f32 %v743, %v71
  %v750 = vadd.f32 %v746, %v72
  %v751 = vsel %vm33, %v749, 0.0
  %752 = vadd.xlane.f32.xlu0 %v751
  %v753 = vpop.xlane.xlu0 %752
  %v754 = vsel %vm33, %v750, 0.0
  %755 = vadd.xlane.f32.xlu0 %v754
  %v756 = vpop.xlane.xlu0 %755
  %v757 = vmul.f32 %v753, %v40
  %v758 = vmul.f32 %v756, %v40
  %v759 = vsub.f32 %v749, %v757
  %v760 = vsub.f32 %v750, %v758
  %v761 = vmul.f32 %v759, %v759
  %v762 = vmul.f32 %v760, %v760
  %v763 = vsel %vm33, %v761, 0.0
  %764 = vadd.xlane.f32.xlu0 %v763
  %v765 = vpop.xlane.xlu0 %764
  %v766 = vsel %vm33, %v762, 0.0
  %767 = vadd.xlane.f32.xlu0 %v766
  %v768 = vpop.xlane.xlu0 %767
  %v769 = vmul.f32 %v765, %v40
  %v770 = vmul.f32 %v768, %v40
  %v771 = vadd.f32 %v769, 1e-12
  %v772 = vadd.f32 %v770, 1e-12
  %v773 = vrsqrt.pop %v771
  %v774 = vrsqrt.pop %v772
  %v775 = vmul.f32 %v759, %v773
  %v776 = vmul.f32 %v760, %v774
  %v777 = vlaneseq
  %v778 = vshrl.u32 %v777, 7
  %v779 = vsub.s32 2, %v778
  %v780 = vrot.slane %v75, %v779
  %v781 = vmul.f32 %v775, %v780
  %v782 = vmul.f32 %v776, %v780
  %v783 = vlaneseq
  %v784 = vshrl.u32 %v783, 7
  %v785 = vsub.s32 3, %v784
  %v786 = vrot.slane %v75, %v785
  %v787 = vadd.f32 %v781, %v786
  %v788 = vadd.f32 %v782, %v786
  %v789 = vld [vmem:[%s6] sm:$0xf]
  %v790 = vld [vmem:[%s6 + $0x4] sm:$0xf]
  %v791 = vld [vmem:[%s6 + $0x8] sm:$0xf]
  %v792 = vld [vmem:[%s6 + $0xc] sm:$0xf]
  %v793 = vpack.c.bf16 %v788, %v787
  %v794 = vlaneseq
  %v795 = vshrl.u32 %v794, 7
  %v796 = vsub.s32 4, %v795
  %v797 = vrot.slane %v75, %v796
  %v802 = vunpack.c.l.b16 %v789
  %v803 = vunpack.c.l.b16 %v790
  %v804 = vunpack.c.l.b16 %v791
  %v805 = vunpack.c.l.b16 %v792
  %v806 = vpack.c.b16 %v803, %v802
  %v807 = vpack.c.b16 %v805, %v804
  %v811 = vsel %vm33, %v793, 0
  %813 = vmatprep.subr.bf16.mxu0 0
  %814 = vmatpush1.bf16.msra.mxu0 0
  %815 = vmatprep.subr.bf16.mxu0 0
  %816 = vmatpush1.bf16.msra.mxu0 0
  %817 = vmatprep.subr.bf16.mxu0 0
  %818 = vmatpush1.bf16.msra.mxu0 0
  %819 = vmatprep.subr.bf16.mxu0 0
  %820 = vmatpush1.bf16.msra.mxu0 0
  %821 = vmatprep.subr.bf16.mxu0 0
  %822 = vmatpush1.bf16.msra.mxu0 0
  %823 = vmatprep.subr.bf16.mxu0 0
  %824 = vmatpush1.bf16.msra.mxu0 0
  %825 = vmatprep.subr.bf16.mxu0 0
  %826 = vmatpush1.bf16.msra.mxu0 %v807
  %827 = vmatprep.subr.bf16.mxu0 0
  %828 = vmatpush1.bf16.msra.mxu0 %v806
  %829 = vmatprep.subr.bf16.mxu0 0
  %830 = vmatpush2.bf16.msra.mxu0 0
  %831 = vmatprep.subr.bf16.mxu0 0
  %832 = vmatpush2.bf16.msra.mxu0 0
  %833 = vmatprep.subr.bf16.mxu0 0
  %834 = vmatpush2.bf16.msra.mxu0 0
  %835 = vmatprep.subr.bf16.mxu0 0
  %836 = vmatpush2.bf16.msra.mxu0 0
  %837 = vmatprep.subr.bf16.mxu0 0
  %838 = vmatpush2.bf16.msra.mxu0 0
  %839 = vmatprep.subr.bf16.mxu0 0
  %840 = vmatpush2.bf16.msra.mxu0 0
  %841 = vmatprep.subr.bf16.mxu0 0
  %842 = vmatpush2.bf16.msra.mxu0 0
  %843 = vmatprep.subr.bf16.mxu0 0
  %844 = vmatpush2.bf16.msra.mxu0 0
  %845 = vmatprep.mubr.bf16.mxu0 0
  %846 = vmatmul.mubr.bf16.gmra.mxu0 %v811
  %v847 = vpop.f32.mrf.mxu0
  %v848 = vadd.f32 %v797, %v847
  %v849 = vpop.f32.mrf.mxu0
  %v850 = vpop.f32.mrf.mxu0
  %v851 = vadd.f32 %v797, %v850
  %v852 = vpop.f32.mrf.mxu0
  %853 = vdwg.mxu0
  %v854 = vmul.f32 %v848, 0.5
  %v855 = vmul.f32 %v851, 0.5
  %v856 = vmul.f32 %v848, 0.044715
  %v857 = vmul.f32 %v851, 0.044715
  %v858 = vmul.f32 %v856, %v848
  %v859 = vmul.f32 %v857, %v851
  %v860 = vmul.f32 %v858, %v848
  %v861 = vmul.f32 %v859, %v851
  %v862 = vadd.f32 %v848, %v860
  %v863 = vadd.f32 %v851, %v861
  %v864 = vmul.f32 %v862, 0.7978846
  %v865 = vmul.f32 %v863, 0.7978846
  %v866 = vtanh.pop %v864
  %v867 = vtanh.pop %v865
  %v868 = vadd.f32 %v866, 1.0
  %v869 = vadd.f32 %v867, 1.0
  %v870 = vmul.f32 %v854, %v868
  %v871 = vmul.f32 %v855, %v869
  %v872 = vld [vmem:[%s7] sm:$0xf]
  %v873 = vld [vmem:[%s7 + $0x4] sm:$0xf]
  %v874 = vld [vmem:[%s7 + $0x8] sm:$0xf]
  %v875 = vld [vmem:[%s7 + $0xc] sm:$0xf]
  %v876 = vld [vmem:[%s7 + $0x10] sm:$0xf]
  %v877 = vld [vmem:[%s7 + $0x14] sm:$0xf]
  %v878 = vld [vmem:[%s7 + $0x18] sm:$0xf]
  %v879 = vld [vmem:[%s7 + $0x1c] sm:$0xf]
  %v880 = vpack.c.bf16 %v871, %v870
  %v881 = vlaneseq
  %v882 = vshrl.u32 %v881, 7
  %v883 = vsub.s32 5, %v882
  %v884 = vrot.slane %v75, %v883
  %v893 = vunpack.c.l.b16 %v872
  %v894 = vunpack.c.l.b16 %v873
  %v895 = vunpack.c.l.b16 %v874
  %v896 = vunpack.c.l.b16 %v875
  %v897 = vunpack.c.l.b16 %v876
  %v898 = vunpack.c.l.b16 %v877
  %v899 = vunpack.c.l.b16 %v878
  %v900 = vunpack.c.l.b16 %v879
  %v901 = vpack.c.b16 %v894, %v893
  %v902 = vpack.c.b16 %v896, %v895
  %v903 = vpack.c.b16 %v898, %v897
  %v904 = vpack.c.b16 %v900, %v899
  %vm909 = vcmask 523264
  %v911 = vsel %vm909, %v880, 0
  %913 = vmatprep.subr.bf16.mxu0 0
  %914 = vmatpush1.bf16.msra.mxu0 0
  %915 = vmatprep.subr.bf16.mxu0 0
  %916 = vmatpush1.bf16.msra.mxu0 0
  %917 = vmatprep.subr.bf16.mxu0 0
  %918 = vmatpush1.bf16.msra.mxu0 0
  %919 = vmatprep.subr.bf16.mxu0 0
  %920 = vmatpush1.bf16.msra.mxu0 0
  %921 = vmatprep.subr.bf16.mxu0 0
  %922 = vmatpush1.bf16.msra.mxu0 %v904
  %923 = vmatprep.subr.bf16.mxu0 0
  %924 = vmatpush1.bf16.msra.mxu0 %v903
  %925 = vmatprep.subr.bf16.mxu0 0
  %926 = vmatpush1.bf16.msra.mxu0 %v902
  %927 = vmatprep.subr.bf16.mxu0 0
  %928 = vmatpush1.bf16.msra.mxu0 %v901
  %929 = vmatprep.subr.bf16.mxu0 0
  %930 = vmatpush2.bf16.msra.mxu0 0
  %931 = vmatprep.subr.bf16.mxu0 0
  %932 = vmatpush2.bf16.msra.mxu0 0
  %933 = vmatprep.subr.bf16.mxu0 0
  %934 = vmatpush2.bf16.msra.mxu0 0
  %935 = vmatprep.subr.bf16.mxu0 0
  %936 = vmatpush2.bf16.msra.mxu0 0
  %937 = vmatprep.subr.bf16.mxu0 0
  %938 = vmatpush2.bf16.msra.mxu0 0
  %939 = vmatprep.subr.bf16.mxu0 0
  %940 = vmatpush2.bf16.msra.mxu0 0
  %941 = vmatprep.subr.bf16.mxu0 0
  %942 = vmatpush2.bf16.msra.mxu0 0
  %943 = vmatprep.subr.bf16.mxu0 0
  %944 = vmatpush2.bf16.msra.mxu0 0
  %945 = vmatprep.mubr.bf16.mxu0 0
  %946 = vmatmul.mubr.bf16.gmra.mxu0 %v911
  %v947 = vpop.f32.mrf.mxu0
  %v948 = vadd.f32 %v884, %v947
  %v949 = vpop.f32.mrf.mxu0
  %v950 = vpop.f32.mrf.mxu0
  %v951 = vadd.f32 %v884, %v950
  %v952 = vpop.f32.mrf.mxu0
  %953 = vdwg.mxu0
  %v954 = vadd.f32 %v948, %v787
  %v955 = vadd.f32 %v951, %v788
  %v956 = vsel %vm33, %v954, 0.0
  %957 = vadd.xlane.f32.xlu0 %v956
  %v958 = vpop.xlane.xlu0 %957
  %v959 = vsel %vm33, %v955, 0.0
  %960 = vadd.xlane.f32.xlu0 %v959
  %v961 = vpop.xlane.xlu0 %960
  %v962 = vmul.f32 %v958, %v40
  %v963 = vmul.f32 %v961, %v40
  %v964 = vsub.f32 %v954, %v962
  %v965 = vsub.f32 %v955, %v963
  %v966 = vmul.f32 %v964, %v964
  %v967 = vmul.f32 %v965, %v965
  %v968 = vsel %vm33, %v966, 0.0
  %969 = vadd.xlane.f32.xlu0 %v968
  %v970 = vpop.xlane.xlu0 %969
  %v971 = vsel %vm33, %v967, 0.0
  %972 = vadd.xlane.f32.xlu0 %v971
  %v973 = vpop.xlane.xlu0 %972
  %v974 = vmul.f32 %v970, %v40
  %v975 = vmul.f32 %v973, %v40
  %v976 = vadd.f32 %v974, 1e-12
  %v977 = vadd.f32 %v975, 1e-12
  %v978 = vrsqrt.pop %v976
  %v979 = vrsqrt.pop %v977
  %v980 = vmul.f32 %v964, %v978
  %v981 = vmul.f32 %v965, %v979
  %v982 = vlaneseq
  %v983 = vshrl.u32 %v982, 7
  %v984 = vsub.s32 6, %v983
  %v985 = vrot.slane %v75, %v984
  %v986 = vmul.f32 %v980, %v985
  %v987 = vmul.f32 %v981, %v985
  %v988 = vlaneseq
  %v989 = vshrl.u32 %v988, 7
  %v990 = vsub.s32 7, %v989
  %v991 = vrot.slane %v75, %v990
  %v992 = vadd.f32 %v986, %v991
  %v993 = vadd.f32 %v987, %v991
  %s994 = scalar_lea.vmem %s3, 8
  %v995 = vld [vmem:[%s994] sm:$0xff]
  %s996 = scalar_lea.vmem %s4, 16
  %v997 = vld [vmem:[%s996] sm:$0xf]
  %v998 = vld [vmem:[%s996 + $0x4] sm:$0xf]
  %v999 = vld [vmem:[%s996 + $0x8] sm:$0xf]
  %v1000 = vld [vmem:[%s996 + $0xc] sm:$0xf]
  %v1001 = vpack.c.bf16 %v993, %v992
  %v1002 = vlaneseq
  %v1003 = vshrl.u32 %v1002, 7
  %v1004 = vsub.s32 0, %v1003
  %v1005 = vrot.slane %v995, %v1004
  %v1010 = vunpack.c.l.b16 %v997
  %v1011 = vunpack.c.l.b16 %v998
  %v1012 = vunpack.c.l.b16 %v999
  %v1013 = vunpack.c.l.b16 %v1000
  %v1014 = vpack.c.b16 %v1011, %v1010
  %v1015 = vpack.c.b16 %v1013, %v1012
  %v1019 = vsel %vm33, %v1001, 0
  %1021 = vmatprep.subr.bf16.mxu0 0
  %1022 = vmatpush1.bf16.msra.mxu0 0
  %1023 = vmatprep.subr.bf16.mxu0 0
  %1024 = vmatpush1.bf16.msra.mxu0 0
  %1025 = vmatprep.subr.bf16.mxu0 0
  %1026 = vmatpush1.bf16.msra.mxu0 0
  %1027 = vmatprep.subr.bf16.mxu0 0
  %1028 = vmatpush1.bf16.msra.mxu0 0
  %1029 = vmatprep.subr.bf16.mxu0 0
  %1030 = vmatpush1.bf16.msra.mxu0 0
  %1031 = vmatprep.subr.bf16.mxu0 0
  %1032 = vmatpush1.bf16.msra.mxu0 0
  %1033 = vmatprep.subr.bf16.mxu0 0
  %1034 = vmatpush1.bf16.msra.mxu0 %v1015
  %1035 = vmatprep.subr.bf16.mxu0 0
  %1036 = vmatpush1.bf16.msra.mxu0 %v1014
  %1037 = vmatprep.subr.bf16.mxu0 0
  %1038 = vmatpush2.bf16.msra.mxu0 0
  %1039 = vmatprep.subr.bf16.mxu0 0
  %1040 = vmatpush2.bf16.msra.mxu0 0
  %1041 = vmatprep.subr.bf16.mxu0 0
  %1042 = vmatpush2.bf16.msra.mxu0 0
  %1043 = vmatprep.subr.bf16.mxu0 0
  %1044 = vmatpush2.bf16.msra.mxu0 0
  %1045 = vmatprep.subr.bf16.mxu0 0
  %1046 = vmatpush2.bf16.msra.mxu0 0
  %1047 = vmatprep.subr.bf16.mxu0 0
  %1048 = vmatpush2.bf16.msra.mxu0 0
  %1049 = vmatprep.subr.bf16.mxu0 0
  %1050 = vmatpush2.bf16.msra.mxu0 0
  %1051 = vmatprep.subr.bf16.mxu0 0
  %1052 = vmatpush2.bf16.msra.mxu0 0
  %1053 = vmatprep.mubr.bf16.mxu0 0
  %1054 = vmatmul.mubr.bf16.gmra.mxu0 %v1019
  %v1055 = vpop.f32.mrf.mxu0
  %v1056 = vadd.f32 %v1005, %v1055
  %v1057 = vpop.f32.mrf.mxu0
  %v1058 = vpop.f32.mrf.mxu0
  %v1059 = vadd.f32 %v1005, %v1058
  %v1060 = vpop.f32.mrf.mxu0
  %1061 = vdwg.mxu0
  %1064 = vrot.lane.b32.xlu0 %v1056, 120
  %v1065 = vpop.permute.xlu0 %1064
  %1066 = vrot.lane.b32.xlu0 %v1059, 120
  %v1067 = vpop.permute.xlu0 %1066
  %1070 = vrot.lane.b32.xlu0 %v1056, 112
  %v1071 = vpop.permute.xlu0 %1070
  %1072 = vrot.lane.b32.xlu0 %v1059, 112
  %v1073 = vpop.permute.xlu0 %1072
  %1076 = vrot.lane.b32.xlu0 %v1056, 104
  %v1077 = vpop.permute.xlu0 %1076
  %1078 = vrot.lane.b32.xlu0 %v1059, 104
  %v1079 = vpop.permute.xlu0 %1078
  %v1082 = vpack.c.bf16 %v1059, %v1056
  %v1083 = vpack.c.bf16 %v1067, %v1065
  %v1084 = vpack.c.bf16 %v1073, %v1071
  %v1085 = vpack.c.bf16 %v1079, %v1077
  %1087 = vrot.lane.b32.xlu0 %v1082, 96
  %v1088 = vpop.permute.xlu0 %1087
  %v1090 = vsel %vm168, %v1082, 0
  %v1093 = vsel %vm168, %v1088, 0
  %1095 = vmatprep.subr.bf16.mxu0 0
  %1096 = vmatpush1.bf16.xpose.msra.mxu0 0
  %1097 = vmatprep.subr.bf16.mxu0 0
  %1098 = vmatpush1.bf16.xpose.msra.mxu0 0
  %1099 = vmatprep.subr.bf16.mxu0 0
  %1100 = vmatpush1.bf16.xpose.msra.mxu0 0
  %1101 = vmatprep.subr.bf16.mxu0 0
  %1102 = vmatpush1.bf16.xpose.msra.mxu0 0
  %1103 = vmatprep.subr.bf16.mxu0 0
  %1104 = vmatpush1.bf16.xpose.msra.mxu0 0
  %1105 = vmatprep.subr.bf16.mxu0 0
  %1106 = vmatpush1.bf16.xpose.msra.mxu0 0
  %1107 = vmatprep.subr.bf16.mxu0 0
  %1108 = vmatpush1.bf16.xpose.msra.mxu0 0
  %1109 = vmatprep.subr.bf16.mxu0 0
  %1110 = vmatpush1.bf16.xpose.msra.mxu0 %v1093
  %1111 = vmatprep.subr.bf16.mxu0 0
  %1112 = vmatpush2.bf16.xpose.msra.mxu0 0
  %1113 = vmatprep.subr.bf16.mxu0 0
  %1114 = vmatpush2.bf16.xpose.msra.mxu0 0
  %1115 = vmatprep.subr.bf16.mxu0 0
  %1116 = vmatpush2.bf16.xpose.msra.mxu0 0
  %1117 = vmatprep.subr.bf16.mxu0 0
  %1118 = vmatpush2.bf16.xpose.msra.mxu0 0
  %1119 = vmatprep.subr.bf16.mxu0 0
  %1120 = vmatpush2.bf16.xpose.msra.mxu0 0
  %1121 = vmatprep.subr.bf16.mxu0 0
  %1122 = vmatpush2.bf16.xpose.msra.mxu0 0
  %1123 = vmatprep.subr.bf16.mxu0 0
  %1124 = vmatpush2.bf16.xpose.msra.mxu0 0
  %1125 = vmatprep.subr.bf16.mxu0 0
  %1126 = vmatpush2.bf16.xpose.msra.mxu0 0
  %1127 = vmatprep.mubr.bf16.mxu0 0
  %1128 = vmatmul.mubr.bf16.gmra.mxu0 %v1090
  %v1129 = vpop.f32.mrf.mxu0
  %v1130 = vadd.f32 %v73, %v1129
  %v1131 = vpop.f32.mrf.mxu0
  %v1132 = vpop.f32.mrf.mxu0
  %v1133 = vadd.f32 %v74, %v1132
  %v1134 = vpop.f32.mrf.mxu0
  %1135 = vdwg.mxu0
  %1137 = vrot.lane.b32.xlu0 %v1083, 96
  %v1138 = vpop.permute.xlu0 %1137
  %v1140 = vsel %vm168, %v1083, 0
  %v1143 = vsel %vm168, %v1138, 0
  %1145 = vmatprep.subr.bf16.mxu0 0
  %1146 = vmatpush1.bf16.xpose.msra.mxu0 0
  %1147 = vmatprep.subr.bf16.mxu0 0
  %1148 = vmatpush1.bf16.xpose.msra.mxu0 0
  %1149 = vmatprep.subr.bf16.mxu0 0
  %1150 = vmatpush1.bf16.xpose.msra.mxu0 0
  %1151 = vmatprep.subr.bf16.mxu0 0
  %1152 = vmatpush1.bf16.xpose.msra.mxu0 0
  %1153 = vmatprep.subr.bf16.mxu0 0
  %1154 = vmatpush1.bf16.xpose.msra.mxu0 0
  %1155 = vmatprep.subr.bf16.mxu0 0
  %1156 = vmatpush1.bf16.xpose.msra.mxu0 0
  %1157 = vmatprep.subr.bf16.mxu0 0
  %1158 = vmatpush1.bf16.xpose.msra.mxu0 0
  %1159 = vmatprep.subr.bf16.mxu0 0
  %1160 = vmatpush1.bf16.xpose.msra.mxu0 %v1143
  %1161 = vmatprep.subr.bf16.mxu0 0
  %1162 = vmatpush2.bf16.xpose.msra.mxu0 0
  %1163 = vmatprep.subr.bf16.mxu0 0
  %1164 = vmatpush2.bf16.xpose.msra.mxu0 0
  %1165 = vmatprep.subr.bf16.mxu0 0
  %1166 = vmatpush2.bf16.xpose.msra.mxu0 0
  %1167 = vmatprep.subr.bf16.mxu0 0
  %1168 = vmatpush2.bf16.xpose.msra.mxu0 0
  %1169 = vmatprep.subr.bf16.mxu0 0
  %1170 = vmatpush2.bf16.xpose.msra.mxu0 0
  %1171 = vmatprep.subr.bf16.mxu0 0
  %1172 = vmatpush2.bf16.xpose.msra.mxu0 0
  %1173 = vmatprep.subr.bf16.mxu0 0
  %1174 = vmatpush2.bf16.xpose.msra.mxu0 0
  %1175 = vmatprep.subr.bf16.mxu0 0
  %1176 = vmatpush2.bf16.xpose.msra.mxu0 0
  %1177 = vmatprep.mubr.bf16.mxu0 0
  %1178 = vmatmul.mubr.bf16.gmra.mxu0 %v1140
  %v1179 = vpop.f32.mrf.mxu0
  %v1180 = vadd.f32 %v73, %v1179
  %v1181 = vpop.f32.mrf.mxu0
  %v1182 = vpop.f32.mrf.mxu0
  %v1183 = vadd.f32 %v74, %v1182
  %v1184 = vpop.f32.mrf.mxu0
  %1185 = vdwg.mxu0
  %1187 = vrot.lane.b32.xlu0 %v1084, 96
  %v1188 = vpop.permute.xlu0 %1187
  %v1190 = vsel %vm168, %v1084, 0
  %v1193 = vsel %vm168, %v1188, 0
  %1195 = vmatprep.subr.bf16.mxu0 0
  %1196 = vmatpush1.bf16.xpose.msra.mxu0 0
  %1197 = vmatprep.subr.bf16.mxu0 0
  %1198 = vmatpush1.bf16.xpose.msra.mxu0 0
  %1199 = vmatprep.subr.bf16.mxu0 0
  %1200 = vmatpush1.bf16.xpose.msra.mxu0 0
  %1201 = vmatprep.subr.bf16.mxu0 0
  %1202 = vmatpush1.bf16.xpose.msra.mxu0 0
  %1203 = vmatprep.subr.bf16.mxu0 0
  %1204 = vmatpush1.bf16.xpose.msra.mxu0 0
  %1205 = vmatprep.subr.bf16.mxu0 0
  %1206 = vmatpush1.bf16.xpose.msra.mxu0 0
  %1207 = vmatprep.subr.bf16.mxu0 0
  %1208 = vmatpush1.bf16.xpose.msra.mxu0 0
  %1209 = vmatprep.subr.bf16.mxu0 0
  %1210 = vmatpush1.bf16.xpose.msra.mxu0 %v1193
  %1211 = vmatprep.subr.bf16.mxu0 0
  %1212 = vmatpush2.bf16.xpose.msra.mxu0 0
  %1213 = vmatprep.subr.bf16.mxu0 0
  %1214 = vmatpush2.bf16.xpose.msra.mxu0 0
  %1215 = vmatprep.subr.bf16.mxu0 0
  %1216 = vmatpush2.bf16.xpose.msra.mxu0 0
  %1217 = vmatprep.subr.bf16.mxu0 0
  %1218 = vmatpush2.bf16.xpose.msra.mxu0 0
  %1219 = vmatprep.subr.bf16.mxu0 0
  %1220 = vmatpush2.bf16.xpose.msra.mxu0 0
  %1221 = vmatprep.subr.bf16.mxu0 0
  %1222 = vmatpush2.bf16.xpose.msra.mxu0 0
  %1223 = vmatprep.subr.bf16.mxu0 0
  %1224 = vmatpush2.bf16.xpose.msra.mxu0 0
  %1225 = vmatprep.subr.bf16.mxu0 0
  %1226 = vmatpush2.bf16.xpose.msra.mxu0 0
  %1227 = vmatprep.mubr.bf16.mxu0 0
  %1228 = vmatmul.mubr.bf16.gmra.mxu0 %v1190
  %v1229 = vpop.f32.mrf.mxu0
  %v1230 = vadd.f32 %v73, %v1229
  %v1231 = vpop.f32.mrf.mxu0
  %v1232 = vpop.f32.mrf.mxu0
  %v1233 = vadd.f32 %v74, %v1232
  %v1234 = vpop.f32.mrf.mxu0
  %1235 = vdwg.mxu0
  %1237 = vrot.lane.b32.xlu0 %v1085, 96
  %v1238 = vpop.permute.xlu0 %1237
  %v1240 = vsel %vm168, %v1085, 0
  %v1243 = vsel %vm168, %v1238, 0
  %1245 = vmatprep.subr.bf16.mxu0 0
  %1246 = vmatpush1.bf16.xpose.msra.mxu0 0
  %1247 = vmatprep.subr.bf16.mxu0 0
  %1248 = vmatpush1.bf16.xpose.msra.mxu0 0
  %1249 = vmatprep.subr.bf16.mxu0 0
  %1250 = vmatpush1.bf16.xpose.msra.mxu0 0
  %1251 = vmatprep.subr.bf16.mxu0 0
  %1252 = vmatpush1.bf16.xpose.msra.mxu0 0
  %1253 = vmatprep.subr.bf16.mxu0 0
  %1254 = vmatpush1.bf16.xpose.msra.mxu0 0
  %1255 = vmatprep.subr.bf16.mxu0 0
  %1256 = vmatpush1.bf16.xpose.msra.mxu0 0
  %1257 = vmatprep.subr.bf16.mxu0 0
  %1258 = vmatpush1.bf16.xpose.msra.mxu0 0
  %1259 = vmatprep.subr.bf16.mxu0 0
  %1260 = vmatpush1.bf16.xpose.msra.mxu0 %v1243
  %1261 = vmatprep.subr.bf16.mxu0 0
  %1262 = vmatpush2.bf16.xpose.msra.mxu0 0
  %1263 = vmatprep.subr.bf16.mxu0 0
  %1264 = vmatpush2.bf16.xpose.msra.mxu0 0
  %1265 = vmatprep.subr.bf16.mxu0 0
  %1266 = vmatpush2.bf16.xpose.msra.mxu0 0
  %1267 = vmatprep.subr.bf16.mxu0 0
  %1268 = vmatpush2.bf16.xpose.msra.mxu0 0
  %1269 = vmatprep.subr.bf16.mxu0 0
  %1270 = vmatpush2.bf16.xpose.msra.mxu0 0
  %1271 = vmatprep.subr.bf16.mxu0 0
  %1272 = vmatpush2.bf16.xpose.msra.mxu0 0
  %1273 = vmatprep.subr.bf16.mxu0 0
  %1274 = vmatpush2.bf16.xpose.msra.mxu0 0
  %1275 = vmatprep.subr.bf16.mxu0 0
  %1276 = vmatpush2.bf16.xpose.msra.mxu0 0
  %1277 = vmatprep.mubr.bf16.mxu0 0
  %1278 = vmatmul.mubr.bf16.gmra.mxu0 %v1240
  %v1279 = vpop.f32.mrf.mxu0
  %v1280 = vadd.f32 %v73, %v1279
  %v1281 = vpop.f32.mrf.mxu0
  %v1282 = vpop.f32.mrf.mxu0
  %v1283 = vadd.f32 %v74, %v1282
  %v1284 = vpop.f32.mrf.mxu0
  %1285 = vdwg.mxu0
  %v1286 = vsel %vm366, %v1130, -inf
  %1287 = vmax.xlane.f32.xlu0 %v1286
  %v1288 = vpop.xlane.xlu0 %1287
  %v1289 = vsel %vm366, %v1133, -inf
  %1290 = vmax.xlane.f32.xlu0 %v1289
  %v1291 = vpop.xlane.xlu0 %1290
  %v1292 = vsel %vm366, %v1180, -inf
  %1293 = vmax.xlane.f32.xlu0 %v1292
  %v1294 = vpop.xlane.xlu0 %1293
  %v1295 = vsel %vm366, %v1183, -inf
  %1296 = vmax.xlane.f32.xlu0 %v1295
  %v1297 = vpop.xlane.xlu0 %1296
  %v1298 = vsel %vm366, %v1230, -inf
  %1299 = vmax.xlane.f32.xlu0 %v1298
  %v1300 = vpop.xlane.xlu0 %1299
  %v1301 = vsel %vm366, %v1233, -inf
  %1302 = vmax.xlane.f32.xlu0 %v1301
  %v1303 = vpop.xlane.xlu0 %1302
  %v1304 = vsel %vm366, %v1280, -inf
  %1305 = vmax.xlane.f32.xlu0 %v1304
  %v1306 = vpop.xlane.xlu0 %1305
  %v1307 = vsel %vm366, %v1283, -inf
  %1308 = vmax.xlane.f32.xlu0 %v1307
  %v1309 = vpop.xlane.xlu0 %1308
  %v1310 = vsub.f32 %v1130, %v1288
  %v1311 = vsub.f32 %v1133, %v1291
  %v1312 = vsub.f32 %v1180, %v1294
  %v1313 = vsub.f32 %v1183, %v1297
  %v1314 = vsub.f32 %v1230, %v1300
  %v1315 = vsub.f32 %v1233, %v1303
  %v1316 = vsub.f32 %v1280, %v1306
  %v1317 = vsub.f32 %v1283, %v1309
  %v1318 = vmul.f32 %v1310, 1.442695
  %v1319 = vpow.pop %v1318
  %v1320 = vmul.f32 %v1311, 1.442695
  %v1321 = vpow.pop %v1320
  %v1322 = vmul.f32 %v1312, 1.442695
  %v1323 = vpow.pop %v1322
  %v1324 = vmul.f32 %v1313, 1.442695
  %v1325 = vpow.pop %v1324
  %v1326 = vmul.f32 %v1314, 1.442695
  %v1327 = vpow.pop %v1326
  %v1328 = vmul.f32 %v1315, 1.442695
  %v1329 = vpow.pop %v1328
  %v1330 = vmul.f32 %v1316, 1.442695
  %v1331 = vpow.pop %v1330
  %v1332 = vmul.f32 %v1317, 1.442695
  %v1333 = vpow.pop %v1332
  %v1334 = vsel %vm366, %v1319, 0.0
  %1335 = vadd.xlane.f32.xlu0 %v1334
  %v1336 = vpop.xlane.xlu0 %1335
  %v1337 = vsel %vm366, %v1321, 0.0
  %1338 = vadd.xlane.f32.xlu0 %v1337
  %v1339 = vpop.xlane.xlu0 %1338
  %v1340 = vsel %vm366, %v1323, 0.0
  %1341 = vadd.xlane.f32.xlu0 %v1340
  %v1342 = vpop.xlane.xlu0 %1341
  %v1343 = vsel %vm366, %v1325, 0.0
  %1344 = vadd.xlane.f32.xlu0 %v1343
  %v1345 = vpop.xlane.xlu0 %1344
  %v1346 = vsel %vm366, %v1327, 0.0
  %1347 = vadd.xlane.f32.xlu0 %v1346
  %v1348 = vpop.xlane.xlu0 %1347
  %v1349 = vsel %vm366, %v1329, 0.0
  %1350 = vadd.xlane.f32.xlu0 %v1349
  %v1351 = vpop.xlane.xlu0 %1350
  %v1352 = vsel %vm366, %v1331, 0.0
  %1353 = vadd.xlane.f32.xlu0 %v1352
  %v1354 = vpop.xlane.xlu0 %1353
  %v1355 = vsel %vm366, %v1333, 0.0
  %1356 = vadd.xlane.f32.xlu0 %v1355
  %v1357 = vpop.xlane.xlu0 %1356
  %v1358 = vrcp.pop %v1336
  %v1359 = vrcp.pop %v1339
  %v1360 = vrcp.pop %v1342
  %v1361 = vrcp.pop %v1345
  %v1362 = vrcp.pop %v1348
  %v1363 = vrcp.pop %v1351
  %v1364 = vrcp.pop %v1354
  %v1365 = vrcp.pop %v1357
  %v1366 = vpack.c.bf16 %v1321, %v1319
  %v1367 = vpack.c.bf16 %v1325, %v1323
  %v1368 = vpack.c.bf16 %v1329, %v1327
  %v1369 = vpack.c.bf16 %v1333, %v1331
  %1370 = vrot.lane.b32.xlu0 %v1082, 64
  %v1371 = vpop.permute.xlu0 %1370
  %v1374 = vsel %vm366, %v1366, 0
  %1376 = vmatprep.subr.bf16.mxu0 0
  %1377 = vmatpush1.bf16.msra.mxu0 0
  %1378 = vmatprep.subr.bf16.mxu0 0
  %1379 = vmatpush1.bf16.msra.mxu0 0
  %1380 = vmatprep.subr.bf16.mxu0 0
  %1381 = vmatpush1.bf16.msra.mxu0 0
  %1382 = vmatprep.subr.bf16.mxu0 0
  %1383 = vmatpush1.bf16.msra.mxu0 0
  %1384 = vmatprep.subr.bf16.mxu0 0
  %1385 = vmatpush1.bf16.msra.mxu0 0
  %1386 = vmatprep.subr.bf16.mxu0 0
  %1387 = vmatpush1.bf16.msra.mxu0 0
  %1388 = vmatprep.subr.bf16.mxu0 0
  %1389 = vmatpush1.bf16.msra.mxu0 0
  %1390 = vmatprep.subr.bf16.mxu0 0
  %1391 = vmatpush1.bf16.msra.mxu0 %v1371
  %1392 = vmatprep.subr.bf16.mxu0 0
  %1393 = vmatpush2.bf16.msra.mxu0 0
  %1394 = vmatprep.subr.bf16.mxu0 0
  %1395 = vmatpush2.bf16.msra.mxu0 0
  %1396 = vmatprep.subr.bf16.mxu0 0
  %1397 = vmatpush2.bf16.msra.mxu0 0
  %1398 = vmatprep.subr.bf16.mxu0 0
  %1399 = vmatpush2.bf16.msra.mxu0 0
  %1400 = vmatprep.subr.bf16.mxu0 0
  %1401 = vmatpush2.bf16.msra.mxu0 0
  %1402 = vmatprep.subr.bf16.mxu0 0
  %1403 = vmatpush2.bf16.msra.mxu0 0
  %1404 = vmatprep.subr.bf16.mxu0 0
  %1405 = vmatpush2.bf16.msra.mxu0 0
  %1406 = vmatprep.subr.bf16.mxu0 0
  %1407 = vmatpush2.bf16.msra.mxu0 0
  %1408 = vmatprep.mubr.bf16.mxu0 0
  %1409 = vmatmul.mubr.bf16.gmra.mxu0 %v1374
  %v1410 = vpop.f32.mrf.mxu0
  %v1411 = vadd.f32 0.0, %v1410
  %v1412 = vpop.f32.mrf.mxu0
  %v1413 = vpop.f32.mrf.mxu0
  %v1414 = vadd.f32 0.0, %v1413
  %v1415 = vpop.f32.mrf.mxu0
  %1416 = vdwg.mxu0
  %1417 = vrot.lane.b32.xlu0 %v1083, 64
  %v1418 = vpop.permute.xlu0 %1417
  %v1421 = vsel %vm366, %v1367, 0
  %1423 = vmatprep.subr.bf16.mxu0 0
  %1424 = vmatpush1.bf16.msra.mxu0 0
  %1425 = vmatprep.subr.bf16.mxu0 0
  %1426 = vmatpush1.bf16.msra.mxu0 0
  %1427 = vmatprep.subr.bf16.mxu0 0
  %1428 = vmatpush1.bf16.msra.mxu0 0
  %1429 = vmatprep.subr.bf16.mxu0 0
  %1430 = vmatpush1.bf16.msra.mxu0 0
  %1431 = vmatprep.subr.bf16.mxu0 0
  %1432 = vmatpush1.bf16.msra.mxu0 0
  %1433 = vmatprep.subr.bf16.mxu0 0
  %1434 = vmatpush1.bf16.msra.mxu0 0
  %1435 = vmatprep.subr.bf16.mxu0 0
  %1436 = vmatpush1.bf16.msra.mxu0 0
  %1437 = vmatprep.subr.bf16.mxu0 0
  %1438 = vmatpush1.bf16.msra.mxu0 %v1418
  %1439 = vmatprep.subr.bf16.mxu0 0
  %1440 = vmatpush2.bf16.msra.mxu0 0
  %1441 = vmatprep.subr.bf16.mxu0 0
  %1442 = vmatpush2.bf16.msra.mxu0 0
  %1443 = vmatprep.subr.bf16.mxu0 0
  %1444 = vmatpush2.bf16.msra.mxu0 0
  %1445 = vmatprep.subr.bf16.mxu0 0
  %1446 = vmatpush2.bf16.msra.mxu0 0
  %1447 = vmatprep.subr.bf16.mxu0 0
  %1448 = vmatpush2.bf16.msra.mxu0 0
  %1449 = vmatprep.subr.bf16.mxu0 0
  %1450 = vmatpush2.bf16.msra.mxu0 0
  %1451 = vmatprep.subr.bf16.mxu0 0
  %1452 = vmatpush2.bf16.msra.mxu0 0
  %1453 = vmatprep.subr.bf16.mxu0 0
  %1454 = vmatpush2.bf16.msra.mxu0 0
  %1455 = vmatprep.mubr.bf16.mxu0 0
  %1456 = vmatmul.mubr.bf16.gmra.mxu0 %v1421
  %v1457 = vpop.f32.mrf.mxu0
  %v1458 = vadd.f32 0.0, %v1457
  %v1459 = vpop.f32.mrf.mxu0
  %v1460 = vpop.f32.mrf.mxu0
  %v1461 = vadd.f32 0.0, %v1460
  %v1462 = vpop.f32.mrf.mxu0
  %1463 = vdwg.mxu0
  %1464 = vrot.lane.b32.xlu0 %v1084, 64
  %v1465 = vpop.permute.xlu0 %1464
  %v1468 = vsel %vm366, %v1368, 0
  %1470 = vmatprep.subr.bf16.mxu0 0
  %1471 = vmatpush1.bf16.msra.mxu0 0
  %1472 = vmatprep.subr.bf16.mxu0 0
  %1473 = vmatpush1.bf16.msra.mxu0 0
  %1474 = vmatprep.subr.bf16.mxu0 0
  %1475 = vmatpush1.bf16.msra.mxu0 0
  %1476 = vmatprep.subr.bf16.mxu0 0
  %1477 = vmatpush1.bf16.msra.mxu0 0
  %1478 = vmatprep.subr.bf16.mxu0 0
  %1479 = vmatpush1.bf16.msra.mxu0 0
  %1480 = vmatprep.subr.bf16.mxu0 0
  %1481 = vmatpush1.bf16.msra.mxu0 0
  %1482 = vmatprep.subr.bf16.mxu0 0
  %1483 = vmatpush1.bf16.msra.mxu0 0
  %1484 = vmatprep.subr.bf16.mxu0 0
  %1485 = vmatpush1.bf16.msra.mxu0 %v1465
  %1486 = vmatprep.subr.bf16.mxu0 0
  %1487 = vmatpush2.bf16.msra.mxu0 0
  %1488 = vmatprep.subr.bf16.mxu0 0
  %1489 = vmatpush2.bf16.msra.mxu0 0
  %1490 = vmatprep.subr.bf16.mxu0 0
  %1491 = vmatpush2.bf16.msra.mxu0 0
  %1492 = vmatprep.subr.bf16.mxu0 0
  %1493 = vmatpush2.bf16.msra.mxu0 0
  %1494 = vmatprep.subr.bf16.mxu0 0
  %1495 = vmatpush2.bf16.msra.mxu0 0
  %1496 = vmatprep.subr.bf16.mxu0 0
  %1497 = vmatpush2.bf16.msra.mxu0 0
  %1498 = vmatprep.subr.bf16.mxu0 0
  %1499 = vmatpush2.bf16.msra.mxu0 0
  %1500 = vmatprep.subr.bf16.mxu0 0
  %1501 = vmatpush2.bf16.msra.mxu0 0
  %1502 = vmatprep.mubr.bf16.mxu0 0
  %1503 = vmatmul.mubr.bf16.gmra.mxu0 %v1468
  %v1504 = vpop.f32.mrf.mxu0
  %v1505 = vadd.f32 0.0, %v1504
  %v1506 = vpop.f32.mrf.mxu0
  %v1507 = vpop.f32.mrf.mxu0
  %v1508 = vadd.f32 0.0, %v1507
  %v1509 = vpop.f32.mrf.mxu0
  %1510 = vdwg.mxu0
  %1511 = vrot.lane.b32.xlu0 %v1085, 64
  %v1512 = vpop.permute.xlu0 %1511
  %v1515 = vsel %vm366, %v1369, 0
  %1517 = vmatprep.subr.bf16.mxu0 0
  %1518 = vmatpush1.bf16.msra.mxu0 0
  %1519 = vmatprep.subr.bf16.mxu0 0
  %1520 = vmatpush1.bf16.msra.mxu0 0
  %1521 = vmatprep.subr.bf16.mxu0 0
  %1522 = vmatpush1.bf16.msra.mxu0 0
  %1523 = vmatprep.subr.bf16.mxu0 0
  %1524 = vmatpush1.bf16.msra.mxu0 0
  %1525 = vmatprep.subr.bf16.mxu0 0
  %1526 = vmatpush1.bf16.msra.mxu0 0
  %1527 = vmatprep.subr.bf16.mxu0 0
  %1528 = vmatpush1.bf16.msra.mxu0 0
  %1529 = vmatprep.subr.bf16.mxu0 0
  %1530 = vmatpush1.bf16.msra.mxu0 0
  %1531 = vmatprep.subr.bf16.mxu0 0
  %1532 = vmatpush1.bf16.msra.mxu0 %v1512
  %1533 = vmatprep.subr.bf16.mxu0 0
  %1534 = vmatpush2.bf16.msra.mxu0 0
  %1535 = vmatprep.subr.bf16.mxu0 0
  %1536 = vmatpush2.bf16.msra.mxu0 0
  %1537 = vmatprep.subr.bf16.mxu0 0
  %1538 = vmatpush2.bf16.msra.mxu0 0
  %1539 = vmatprep.subr.bf16.mxu0 0
  %1540 = vmatpush2.bf16.msra.mxu0 0
  %1541 = vmatprep.subr.bf16.mxu0 0
  %1542 = vmatpush2.bf16.msra.mxu0 0
  %1543 = vmatprep.subr.bf16.mxu0 0
  %1544 = vmatpush2.bf16.msra.mxu0 0
  %1545 = vmatprep.subr.bf16.mxu0 0
  %1546 = vmatpush2.bf16.msra.mxu0 0
  %1547 = vmatprep.subr.bf16.mxu0 0
  %1548 = vmatpush2.bf16.msra.mxu0 0
  %1549 = vmatprep.mubr.bf16.mxu0 0
  %1550 = vmatmul.mubr.bf16.gmra.mxu0 %v1515
  %v1551 = vpop.f32.mrf.mxu0
  %v1552 = vadd.f32 0.0, %v1551
  %v1553 = vpop.f32.mrf.mxu0
  %v1554 = vpop.f32.mrf.mxu0
  %v1555 = vadd.f32 0.0, %v1554
  %v1556 = vpop.f32.mrf.mxu0
  %1557 = vdwg.mxu0
  %v1558 = vmul.f32 %v1411, %v1358
  %v1559 = vmul.f32 %v1414, %v1359
  %v1560 = vmul.f32 %v1458, %v1360
  %v1561 = vmul.f32 %v1461, %v1361
  %v1562 = vmul.f32 %v1505, %v1362
  %v1563 = vmul.f32 %v1508, %v1363
  %v1564 = vmul.f32 %v1552, %v1364
  %v1565 = vmul.f32 %v1555, %v1365
  %1566 = vst.msk [vmem:[#allocation2] sm:$0xff] %vm168, %v1558
  %1567 = vst.msk [vmem:[#allocation2 + $0x8] sm:$0xff] %vm168, %v1559
  %1570 = vrot.lane.b32.xlu0 %v1560, 8
  %v1571 = vpop.permute.xlu0 %1570
  %1572 = vrot.lane.b32.xlu0 %v1561, 8
  %v1573 = vpop.permute.xlu0 %1572
  %1576 = vst.msk [vmem:[#allocation2] sm:$0xff] %vm657, %v1571
  %1577 = vst.msk [vmem:[#allocation2 + $0x8] sm:$0xff] %vm657, %v1573
  %1580 = vrot.lane.b32.xlu0 %v1562, 16
  %v1581 = vpop.permute.xlu0 %1580
  %1582 = vrot.lane.b32.xlu0 %v1563, 16
  %v1583 = vpop.permute.xlu0 %1582
  %1586 = vst.msk [vmem:[#allocation2] sm:$0xff] %vm668, %v1581
  %1587 = vst.msk [vmem:[#allocation2 + $0x8] sm:$0xff] %vm668, %v1583
  %1590 = vrot.lane.b32.xlu0 %v1564, 24
  %v1591 = vpop.permute.xlu0 %1590
  %1592 = vrot.lane.b32.xlu0 %v1565, 24
  %v1593 = vpop.permute.xlu0 %1592
  %1596 = vst.msk [vmem:[#allocation2] sm:$0xff] %vm679, %v1591
  %1597 = vst.msk [vmem:[#allocation2 + $0x8] sm:$0xff] %vm679, %v1593
  %v1598 = vld [vmem:[#allocation2] sm:$0xff]
  %v1599 = vld [vmem:[#allocation2 + $0x8] sm:$0xff]
  %s1600 = scalar_lea.vmem %s5, 16
  %v1601 = vld [vmem:[%s1600] sm:$0xf]
  %v1602 = vld [vmem:[%s1600 + $0x4] sm:$0xf]
  %v1603 = vld [vmem:[%s1600 + $0x8] sm:$0xf]
  %v1604 = vld [vmem:[%s1600 + $0xc] sm:$0xf]
  %v1605 = vpack.c.bf16 %v1599, %v1598
  %v1606 = vlaneseq
  %v1607 = vshrl.u32 %v1606, 7
  %v1608 = vsub.s32 1, %v1607
  %v1609 = vrot.slane %v995, %v1608
  %v1614 = vunpack.c.l.b16 %v1601
  %v1615 = vunpack.c.l.b16 %v1602
  %v1616 = vunpack.c.l.b16 %v1603
  %v1617 = vunpack.c.l.b16 %v1604
  %v1618 = vpack.c.b16 %v1615, %v1614
  %v1619 = vpack.c.b16 %v1617, %v1616
  %v1623 = vsel %vm33, %v1605, 0
  %1625 = vmatprep.subr.bf16.mxu0 0
  %1626 = vmatpush1.bf16.msra.mxu0 0
  %1627 = vmatprep.subr.bf16.mxu0 0
  %1628 = vmatpush1.bf16.msra.mxu0 0
  %1629 = vmatprep.subr.bf16.mxu0 0
  %1630 = vmatpush1.bf16.msra.mxu0 0
  %1631 = vmatprep.subr.bf16.mxu0 0
  %1632 = vmatpush1.bf16.msra.mxu0 0
  %1633 = vmatprep.subr.bf16.mxu0 0
  %1634 = vmatpush1.bf16.msra.mxu0 0
  %1635 = vmatprep.subr.bf16.mxu0 0
  %1636 = vmatpush1.bf16.msra.mxu0 0
  %1637 = vmatprep.subr.bf16.mxu0 0
  %1638 = vmatpush1.bf16.msra.mxu0 %v1619
  %1639 = vmatprep.subr.bf16.mxu0 0
  %1640 = vmatpush1.bf16.msra.mxu0 %v1618
  %1641 = vmatprep.subr.bf16.mxu0 0
  %1642 = vmatpush2.bf16.msra.mxu0 0
  %1643 = vmatprep.subr.bf16.mxu0 0
  %1644 = vmatpush2.bf16.msra.mxu0 0
  %1645 = vmatprep.subr.bf16.mxu0 0
  %1646 = vmatpush2.bf16.msra.mxu0 0
  %1647 = vmatprep.subr.bf16.mxu0 0
  %1648 = vmatpush2.bf16.msra.mxu0 0
  %1649 = vmatprep.subr.bf16.mxu0 0
  %1650 = vmatpush2.bf16.msra.mxu0 0
  %1651 = vmatprep.subr.bf16.mxu0 0
  %1652 = vmatpush2.bf16.msra.mxu0 0
  %1653 = vmatprep.subr.bf16.mxu0 0
  %1654 = vmatpush2.bf16.msra.mxu0 0
  %1655 = vmatprep.subr.bf16.mxu0 0
  %1656 = vmatpush2.bf16.msra.mxu0 0
  %1657 = vmatprep.mubr.bf16.mxu0 0
  %1658 = vmatmul.mubr.bf16.gmra.mxu0 %v1623
  %v1659 = vpop.f32.mrf.mxu0
  %v1660 = vadd.f32 %v1609, %v1659
  %v1661 = vpop.f32.mrf.mxu0
  %v1662 = vpop.f32.mrf.mxu0
  %v1663 = vadd.f32 %v1609, %v1662
  %v1664 = vpop.f32.mrf.mxu0
  %1665 = vdwg.mxu0
  %v1666 = vadd.f32 %v1660, %v992
  %v1667 = vadd.f32 %v1663, %v993
  %v1668 = vsel %vm33, %v1666, 0.0
  %1669 = vadd.xlane.f32.xlu0 %v1668
  %v1670 = vpop.xlane.xlu0 %1669
  %v1671 = vsel %vm33, %v1667, 0.0
  %1672 = vadd.xlane.f32.xlu0 %v1671
  %v1673 = vpop.xlane.xlu0 %1672
  %v1674 = vmul.f32 %v1670, %v40
  %v1675 = vmul.f32 %v1673, %v40
  %v1676 = vsub.f32 %v1666, %v1674
  %v1677 = vsub.f32 %v1667, %v1675
  %v1678 = vmul.f32 %v1676, %v1676
  %v1679 = vmul.f32 %v1677, %v1677
  %v1680 = vsel %vm33, %v1678, 0.0
  %1681 = vadd.xlane.f32.xlu0 %v1680
  %v1682 = vpop.xlane.xlu0 %1681
  %v1683 = vsel %vm33, %v1679, 0.0
  %1684 = vadd.xlane.f32.xlu0 %v1683
  %v1685 = vpop.xlane.xlu0 %1684
  %v1686 = vmul.f32 %v1682, %v40
  %v1687 = vmul.f32 %v1685, %v40
  %v1688 = vadd.f32 %v1686, 1e-12
  %v1689 = vadd.f32 %v1687, 1e-12
  %v1690 = vrsqrt.pop %v1688
  %v1691 = vrsqrt.pop %v1689
  %v1692 = vmul.f32 %v1676, %v1690
  %v1693 = vmul.f32 %v1677, %v1691
  %v1694 = vlaneseq
  %v1695 = vshrl.u32 %v1694, 7
  %v1696 = vsub.s32 2, %v1695
  %v1697 = vrot.slane %v995, %v1696
  %v1698 = vmul.f32 %v1692, %v1697
  %v1699 = vmul.f32 %v1693, %v1697
  %v1700 = vlaneseq
  %v1701 = vshrl.u32 %v1700, 7
  %v1702 = vsub.s32 3, %v1701
  %v1703 = vrot.slane %v995, %v1702
  %v1704 = vadd.f32 %v1698, %v1703
  %v1705 = vadd.f32 %v1699, %v1703
  %s1706 = scalar_lea.vmem %s6, 16
  %v1707 = vld [vmem:[%s1706] sm:$0xf]
  %v1708 = vld [vmem:[%s1706 + $0x4] sm:$0xf]
  %v1709 = vld [vmem:[%s1706 + $0x8] sm:$0xf]
  %v1710 = vld [vmem:[%s1706 + $0xc] sm:$0xf]
  %v1711 = vpack.c.bf16 %v1705, %v1704
  %v1712 = vlaneseq
  %v1713 = vshrl.u32 %v1712, 7
  %v1714 = vsub.s32 4, %v1713
  %v1715 = vrot.slane %v995, %v1714
  %v1720 = vunpack.c.l.b16 %v1707
  %v1721 = vunpack.c.l.b16 %v1708
  %v1722 = vunpack.c.l.b16 %v1709
  %v1723 = vunpack.c.l.b16 %v1710
  %v1724 = vpack.c.b16 %v1721, %v1720
  %v1725 = vpack.c.b16 %v1723, %v1722
  %v1729 = vsel %vm33, %v1711, 0
  %1731 = vmatprep.subr.bf16.mxu0 0
  %1732 = vmatpush1.bf16.msra.mxu0 0
  %1733 = vmatprep.subr.bf16.mxu0 0
  %1734 = vmatpush1.bf16.msra.mxu0 0
  %1735 = vmatprep.subr.bf16.mxu0 0
  %1736 = vmatpush1.bf16.msra.mxu0 0
  %1737 = vmatprep.subr.bf16.mxu0 0
  %1738 = vmatpush1.bf16.msra.mxu0 0
  %1739 = vmatprep.subr.bf16.mxu0 0
  %1740 = vmatpush1.bf16.msra.mxu0 0
  %1741 = vmatprep.subr.bf16.mxu0 0
  %1742 = vmatpush1.bf16.msra.mxu0 0
  %1743 = vmatprep.subr.bf16.mxu0 0
  %1744 = vmatpush1.bf16.msra.mxu0 %v1725
  %1745 = vmatprep.subr.bf16.mxu0 0
  %1746 = vmatpush1.bf16.msra.mxu0 %v1724
  %1747 = vmatprep.subr.bf16.mxu0 0
  %1748 = vmatpush2.bf16.msra.mxu0 0
  %1749 = vmatprep.subr.bf16.mxu0 0
  %1750 = vmatpush2.bf16.msra.mxu0 0
  %1751 = vmatprep.subr.bf16.mxu0 0
  %1752 = vmatpush2.bf16.msra.mxu0 0
  %1753 = vmatprep.subr.bf16.mxu0 0
  %1754 = vmatpush2.bf16.msra.mxu0 0
  %1755 = vmatprep.subr.bf16.mxu0 0
  %1756 = vmatpush2.bf16.msra.mxu0 0
  %1757 = vmatprep.subr.bf16.mxu0 0
  %1758 = vmatpush2.bf16.msra.mxu0 0
  %1759 = vmatprep.subr.bf16.mxu0 0
  %1760 = vmatpush2.bf16.msra.mxu0 0
  %1761 = vmatprep.subr.bf16.mxu0 0
  %1762 = vmatpush2.bf16.msra.mxu0 0
  %1763 = vmatprep.mubr.bf16.mxu0 0
  %1764 = vmatmul.mubr.bf16.gmra.mxu0 %v1729
  %v1765 = vpop.f32.mrf.mxu0
  %v1766 = vadd.f32 %v1715, %v1765
  %v1767 = vpop.f32.mrf.mxu0
  %v1768 = vpop.f32.mrf.mxu0
  %v1769 = vadd.f32 %v1715, %v1768
  %v1770 = vpop.f32.mrf.mxu0
  %1771 = vdwg.mxu0
  %v1772 = vmul.f32 %v1766, 0.5
  %v1773 = vmul.f32 %v1769, 0.5
  %v1774 = vmul.f32 %v1766, 0.044715
  %v1775 = vmul.f32 %v1769, 0.044715
  %v1776 = vmul.f32 %v1774, %v1766
  %v1777 = vmul.f32 %v1775, %v1769
  %v1778 = vmul.f32 %v1776, %v1766
  %v1779 = vmul.f32 %v1777, %v1769
  %v1780 = vadd.f32 %v1766, %v1778
  %v1781 = vadd.f32 %v1769, %v1779
  %v1782 = vmul.f32 %v1780, 0.7978846
  %v1783 = vmul.f32 %v1781, 0.7978846
  %v1784 = vtanh.pop %v1782
  %v1785 = vtanh.pop %v1783
  %v1786 = vadd.f32 %v1784, 1.0
  %v1787 = vadd.f32 %v1785, 1.0
  %v1788 = vmul.f32 %v1772, %v1786
  %v1789 = vmul.f32 %v1773, %v1787
  %s1790 = scalar_lea.vmem %s7, 32
  %v1791 = vld [vmem:[%s1790] sm:$0xf]
  %v1792 = vld [vmem:[%s1790 + $0x4] sm:$0xf]
  %v1793 = vld [vmem:[%s1790 + $0x8] sm:$0xf]
  %v1794 = vld [vmem:[%s1790 + $0xc] sm:$0xf]
  %v1795 = vld [vmem:[%s1790 + $0x10] sm:$0xf]
  %v1796 = vld [vmem:[%s1790 + $0x14] sm:$0xf]
  %v1797 = vld [vmem:[%s1790 + $0x18] sm:$0xf]
  %v1798 = vld [vmem:[%s1790 + $0x1c] sm:$0xf]
  %v1799 = vpack.c.bf16 %v1789, %v1788
  %v1800 = vlaneseq
  %v1801 = vshrl.u32 %v1800, 7
  %v1802 = vsub.s32 5, %v1801
  %v1803 = vrot.slane %v995, %v1802
  %v1812 = vunpack.c.l.b16 %v1791
  %v1813 = vunpack.c.l.b16 %v1792
  %v1814 = vunpack.c.l.b16 %v1793
  %v1815 = vunpack.c.l.b16 %v1794
  %v1816 = vunpack.c.l.b16 %v1795
  %v1817 = vunpack.c.l.b16 %v1796
  %v1818 = vunpack.c.l.b16 %v1797
  %v1819 = vunpack.c.l.b16 %v1798
  %v1820 = vpack.c.b16 %v1813, %v1812
  %v1821 = vpack.c.b16 %v1815, %v1814
  %v1822 = vpack.c.b16 %v1817, %v1816
  %v1823 = vpack.c.b16 %v1819, %v1818
  %v1829 = vsel %vm909, %v1799, 0
  %1831 = vmatprep.subr.bf16.mxu0 0
  %1832 = vmatpush1.bf16.msra.mxu0 0
  %1833 = vmatprep.subr.bf16.mxu0 0
  %1834 = vmatpush1.bf16.msra.mxu0 0
  %1835 = vmatprep.subr.bf16.mxu0 0
  %1836 = vmatpush1.bf16.msra.mxu0 0
  %1837 = vmatprep.subr.bf16.mxu0 0
  %1838 = vmatpush1.bf16.msra.mxu0 0
  %1839 = vmatprep.subr.bf16.mxu0 0
  %1840 = vmatpush1.bf16.msra.mxu0 %v1823
  %1841 = vmatprep.subr.bf16.mxu0 0
  %1842 = vmatpush1.bf16.msra.mxu0 %v1822
  %1843 = vmatprep.subr.bf16.mxu0 0
  %1844 = vmatpush1.bf16.msra.mxu0 %v1821
  %1845 = vmatprep.subr.bf16.mxu0 0
  %1846 = vmatpush1.bf16.msra.mxu0 %v1820
  %1847 = vmatprep.subr.bf16.mxu0 0
  %1848 = vmatpush2.bf16.msra.mxu0 0
  %1849 = vmatprep.subr.bf16.mxu0 0
  %1850 = vmatpush2.bf16.msra.mxu0 0
  %1851 = vmatprep.subr.bf16.mxu0 0
  %1852 = vmatpush2.bf16.msra.mxu0 0
  %1853 = vmatprep.subr.bf16.mxu0 0
  %1854 = vmatpush2.bf16.msra.mxu0 0
  %1855 = vmatprep.subr.bf16.mxu0 0
  %1856 = vmatpush2.bf16.msra.mxu0 0
  %1857 = vmatprep.subr.bf16.mxu0 0
  %1858 = vmatpush2.bf16.msra.mxu0 0
  %1859 = vmatprep.subr.bf16.mxu0 0
  %1860 = vmatpush2.bf16.msra.mxu0 0
  %1861 = vmatprep.subr.bf16.mxu0 0
  %1862 = vmatpush2.bf16.msra.mxu0 0
  %1863 = vmatprep.mubr.bf16.mxu0 0
  %1864 = vmatmul.mubr.bf16.gmra.mxu0 %v1829
  %v1865 = vpop.f32.mrf.mxu0
  %v1866 = vadd.f32 %v1803, %v1865
  %v1867 = vpop.f32.mrf.mxu0
  %v1868 = vpop.f32.mrf.mxu0
  %v1869 = vadd.f32 %v1803, %v1868
  %v1870 = vpop.f32.mrf.mxu0
  %1871 = vdwg.mxu0
  %v1872 = vadd.f32 %v1866, %v1704
  %v1873 = vadd.f32 %v1869, %v1705
  %v1874 = vsel %vm33, %v1872, 0.0
  %1875 = vadd.xlane.f32.xlu0 %v1874
  %v1876 = vpop.xlane.xlu0 %1875
  %v1877 = vsel %vm33, %v1873, 0.0
  %1878 = vadd.xlane.f32.xlu0 %v1877
  %v1879 = vpop.xlane.xlu0 %1878
  %v1880 = vmul.f32 %v1876, %v40
  %v1881 = vmul.f32 %v1879, %v40
  %v1882 = vsub.f32 %v1872, %v1880
  %v1883 = vsub.f32 %v1873, %v1881
  %v1884 = vmul.f32 %v1882, %v1882
  %v1885 = vmul.f32 %v1883, %v1883
  %v1886 = vsel %vm33, %v1884, 0.0
  %1887 = vadd.xlane.f32.xlu0 %v1886
  %v1888 = vpop.xlane.xlu0 %1887
  %v1889 = vsel %vm33, %v1885, 0.0
  %1890 = vadd.xlane.f32.xlu0 %v1889
  %v1891 = vpop.xlane.xlu0 %1890
  %v1892 = vmul.f32 %v1888, %v40
  %v1893 = vmul.f32 %v1891, %v40
  %v1894 = vadd.f32 %v1892, 1e-12
  %v1895 = vadd.f32 %v1893, 1e-12
  %v1896 = vrsqrt.pop %v1894
  %v1897 = vrsqrt.pop %v1895
  %v1898 = vmul.f32 %v1882, %v1896
  %v1899 = vmul.f32 %v1883, %v1897
  %v1900 = vlaneseq
  %v1901 = vshrl.u32 %v1900, 7
  %v1902 = vsub.s32 6, %v1901
  %v1903 = vrot.slane %v995, %v1902
  %v1904 = vmul.f32 %v1898, %v1903
  %v1905 = vmul.f32 %v1899, %v1903
  %v1906 = vlaneseq
  %v1907 = vshrl.u32 %v1906, 7
  %v1908 = vsub.s32 7, %v1907
  %v1909 = vrot.slane %v995, %v1908
  %v1910 = vadd.f32 %v1904, %v1909
  %v1911 = vadd.f32 %v1905, %v1909
  %v1912 = vpack.c.bf16 %v30, %v30
  %v1913 = vpack.c.bf16 %v1911, %v1910
  %1915 = vset.pattern.permute.xlu0 0
  %1916 = vperm.xlu0 %1915, %v30
  %v1917 = vpop.permute.xlu0 %1916
  %v1919 = vrot.slane %v1912, 1
  %v1920 = vrot.slane %v1917, 4
  %v1923 = vsel %vm33, %v1919, 0
  %v1926 = vsel %vm33, %v1913, 0
  %1928 = vmatprep.subr.bf16.mxu0 0
  %1929 = vmatpush1.bf16.xpose.msra.mxu0 0
  %1930 = vmatprep.subr.bf16.mxu0 0
  %1931 = vmatpush1.bf16.xpose.msra.mxu0 0
  %1932 = vmatprep.subr.bf16.mxu0 0
  %1933 = vmatpush1.bf16.xpose.msra.mxu0 0
  %1934 = vmatprep.subr.bf16.mxu0 0
  %1935 = vmatpush1.bf16.xpose.msra.mxu0 0
  %1936 = vmatprep.subr.bf16.mxu0 0
  %1937 = vmatpush1.bf16.xpose.msra.mxu0 0
  %1938 = vmatprep.subr.bf16.mxu0 0
  %1939 = vmatpush1.bf16.xpose.msra.mxu0 0
  %1940 = vmatprep.subr.bf16.mxu0 0
  %1941 = vmatpush1.bf16.xpose.msra.mxu0 0
  %1942 = vmatprep.subr.bf16.mxu0 0
  %1943 = vmatpush1.bf16.xpose.msra.mxu0 %v1926
  %1944 = vmatprep.subr.bf16.mxu0 0
  %1945 = vmatpush2.bf16.xpose.msra.mxu0 0
  %1946 = vmatprep.subr.bf16.mxu0 0
  %1947 = vmatpush2.bf16.xpose.msra.mxu0 0
  %1948 = vmatprep.subr.bf16.mxu0 0
  %1949 = vmatpush2.bf16.xpose.msra.mxu0 0
  %1950 = vmatprep.subr.bf16.mxu0 0
  %1951 = vmatpush2.bf16.xpose.msra.mxu0 0
  %1952 = vmatprep.subr.bf16.mxu0 0
  %1953 = vmatpush2.bf16.xpose.msra.mxu0 0
  %1954 = vmatprep.subr.bf16.mxu0 0
  %1955 = vmatpush2.bf16.xpose.msra.mxu0 0
  %1956 = vmatprep.subr.bf16.mxu0 0
  %1957 = vmatpush2.bf16.xpose.msra.mxu0 0
  %1958 = vmatprep.subr.bf16.mxu0 0
  %1959 = vmatpush2.bf16.xpose.msra.mxu0 0
  %1960 = vmatprep.mubr.bf16.mxu0 0
  %1961 = vmatmul.mubr.bf16.gmra.mxu0 %v1923
  %v1962 = vpop.f32.mrf.mxu0
  %v1963 = vadd.f32 %v1920, %v1962
  %v1964 = vpop.f32.mrf.mxu0
  %v1965 = vpop.f32.mrf.mxu0
  %v1966 = vpop.f32.mrf.mxu0
  %1967 = vdwg.mxu0
  %vm1968 = vcmask 123904
  %1969 = vst.msk [vmem:[%s8] sm:$0x3] %vm1968, %v1963
  // Predicated region
  $region34: #{cre_forward.1} parent=0 // pred_check
    _
  $region35: #{cre_forward.1} parent=0 // pred_check_branch
    %1971 = sbr.rel (0) target = $region37
  $region36: #{cre_forward.1} parent=0 // pred_region
    _
  $region37: #{cre_forward.1} parent=0 // pred_fallthru
    _
  // Predicated region
  $region38: #{cre_forward.1} parent=0 // pred_check
    _
  $region39: #{cre_forward.1} parent=0 // pred_check_branch
    %1973 = sbr.rel (0) target = $region41
  $region40: #{cre_forward.1} parent=0 // pred_region
    _
  $region41: #{cre_forward.1} parent=0 // pred_fallthru
    _

</llo_original>
